<compile_context>
chip_gen: v5e
topology: v5e:2x2
jax: 0.10.0
libtpu: 0.0.40
codegen_flags: <defaults>
</compile_context>

<pallas_src>
import functools

import jax
import jax.numpy as jnp
from jax import lax
from jax.experimental import pallas as pl
from jax.experimental.pallas import tpu as pltpu


def _albert_embeddings_kernel(
    wid_sm,    # (n_tok,) int32 SMEM   scalar-prefetched word ids (pre-clamped to [0, V-1])
    pid_ref,   # (tm, 1)  int32 VMEM   position ids (only read on the one-hot fallback)
    tid_ref,   # (tm, 1)  int32 VMEM   token-type ids
    ptab_ref,  # (P, E)   f32   VMEM   position table (small, resident)
    ttab_ref,  # (T, E)   f32   VMEM   token-type table (tiny, resident)
    g_ref,     # (1, E)   f32          LayerNorm gamma
    b_ref,     # (1, E)   f32          LayerNorm beta
    wtab_hbm,  # (V, E)   f32   HBM    word table (memory_space=pl.ANY)
    out_ref,   # (tm, E)
    wbuf,      # (2, tm, E) f32 VMEM   cross-step double-buffered gathered word rows
    gsem,      # (2,) DMA semaphores   one per wbuf slot
    *,
    tm: int,
    seq_len: int,
    eps: float,
    pos_mode: str,   # "slice" | "tile" | "onehot"
    unroll: int,
):
    i = pl.program_id(0)
    nsteps = pl.num_programs(0)
    slot = lax.rem(i, 2)

    def issue_tile(tile_idx, dst_slot):
        # One (1, E) row DMA per token of the tile; all signal gsem[dst_slot].
        base = tile_idx * tm

        def body(r, carry):
            row = wid_sm[base + r]
            pltpu.make_async_copy(
                wtab_hbm.at[pl.ds(row, 1)],
                wbuf.at[dst_slot, pl.ds(r, 1)],
                gsem.at[dst_slot],
            ).start()
            return carry

        lax.fori_loop(0, tm, body, 0, unroll=unroll)

    # Prime slot 0 with tile 0's rows on the first grid step.
    @pl.when(i == 0)
    def _():
        issue_tile(0, 0)

    # Prefetch the *next* tile before waiting on the current one, so gather latency
    # overlaps this step's compute and output writeback.  (All SMEM scalar reads
    # happen before the wait below.)
    @pl.when(i + 1 < nsteps)
    def _():
        issue_tile(i + 1, lax.rem(i + 1, 2))

    # One aggregated wait: DMA semaphores count bytes, so a single (tm, E)
    # descriptor matches the tm (1, E) row copies issued into this slot.
    # (Relies on every gather copy being exactly one (1, E) f32 row; requires
    # tm <= V so the descriptor slice is valid -- asserted in the wrapper.)
    pltpu.make_async_copy(
        wtab_hbm.at[pl.ds(0, tm)], wbuf.at[slot], gsem.at[slot]
    ).wait()

    words = wbuf[slot]                                             # (tm, E)

    # ---- position rows ----------------------------------------------------------
    if pos_mode == "slice":
        # Default position_ids, tm <= S, S % tm == 0: this tile's positions are a
        # contiguous run of rows of the resident table.
        start = pl.multiple_of(lax.rem(i * tm, seq_len), tm)
        pos = ptab_ref[pl.ds(start, tm), :]
    elif pos_mode == "tile":
        # Default position_ids, tm % S == 0: positions 0..S-1 repeat inside a tile.
        reps = tm // seq_len
        pos = jnp.tile(ptab_ref[0:seq_len, :], (reps, 1))
    else:
        # Arbitrary position_ids: exact f32 one-hot selection against the small
        # resident table (out-of-range ids select the zero row).
        p_rows = ptab_ref.shape[0]
        pid = pid_ref[...]                                         # (tm, 1)
        p_onehot = pid == lax.broadcasted_iota(jnp.int32, (tm, p_rows), 1)
        pos = jnp.dot(p_onehot.astype(jnp.float32), ptab_ref[...],
                      preferred_element_type=jnp.float32)

    # ---- token-type rows: T == 2 -> VPU select; otherwise tiny one-hot matmul ----
    t_rows = ttab_ref.shape[0]
    tid = tid_ref[...]                                             # (tm, 1)
    if t_rows == 2:
        trows = ttab_ref[...]                                      # (2, E)
        # NOTE: any token_type_id >= 2 maps to row 1 (PyTorch would index-error).
        typ = jnp.where(tid == 0, trows[0:1, :], trows[1:2, :])    # (tm, E)
    else:
        t_onehot = tid == lax.broadcasted_iota(jnp.int32, (tm, t_rows), 1)
        typ = jnp.dot(t_onehot.astype(jnp.float32), ttab_ref[...],
                      preferred_element_type=jnp.float32)

    x = words + pos + typ

    # ---- BertLayerNorm: (x - u) * rsqrt(var + eps) * gamma + beta ----------------
    inv_e = 1.0 / x.shape[-1]
    u = jnp.sum(x, axis=-1, keepdims=True) * inv_e
    d = x - u
    s = jnp.sum(d * d, axis=-1, keepdims=True) * inv_e
    xn = d * lax.rsqrt(s + eps)
    out_ref[...] = (xn * g_ref[...] + b_ref[...]).astype(out_ref.dtype)
    # Dropout: identity in eval mode.


def _pick_tile(n_tok: int, preferred: int = 512) -> int:
    cands = []
    if preferred % 8 == 0:
        cands.append(preferred)
    cands.extend((1024, 512, 256, 128, 64, 32, 16, 8))
    for cand in cands:
        if 0 < cand <= n_tok and n_tok % cand == 0:
            return cand
    return n_tok   # single tile covering all tokens (block == full dim is legal)


def albert_embeddings(
    input_ids,            # (B, S) int32
    word_table,           # (V, E) f32
    pos_table,            # (P, E) f32
    type_table,           # (T, E) f32
    gamma,                # (E,)   f32
    beta,                 # (E,)   f32
    token_type_ids=None,  # (B, S) int32 or None
    position_ids=None,    # (B, S) int32 or None
    *,
    eps: float = 1e-5,      # matches BertLayerNorm(eps=1e-05) in the module
    tm: int = 512,          # tokens per grid step
    out_dtype=jnp.float32,  # set to jnp.bfloat16 to halve HBM write traffic
    gather_unroll: int = 8,
):
    B, S = input_ids.shape
    V, E = word_table.shape
    P, _ = pos_table.shape
    T, _ = type_table.shape

    n_tok = B * S
    tm = _pick_tile(n_tok, tm)
    assert n_tok % tm == 0
    assert tm <= V, "aggregated DMA-wait descriptor needs tm <= vocab_size"
    assert S <= P, "sequence length exceeds max_position_embeddings"
    assert E % 128 == 0, "embedding size must be lane-aligned for this kernel"

    # Position handling: fast contiguous paths when position_ids is the default.
    if position_ids is None:
        if tm <= S and S % tm == 0:
            pos_mode = "slice"
        elif tm % S == 0 and S % 8 == 0:
            pos_mode = "tile"
        else:
            pos_mode = "onehot"
        position_ids = jnp.broadcast_to(
            jnp.arange(S, dtype=jnp.int32)[None, :], (B, S))
    else:
        pos_mode = "onehot"
    if token_type_ids is None:
        token_type_ids = jnp.zeros_like(input_ids)

    # Word ids are used only for DMA addressing; clamp so a malformed id can never
    # address outside the HBM table.
    wid = jnp.clip(input_ids.reshape(n_tok).astype(jnp.int32), 0, V - 1)
    pid = position_ids.reshape(n_tok, 1).astype(jnp.int32)
    tid = token_type_ids.reshape(n_tok, 1).astype(jnp.int32)
    g2 = gamma.reshape(1, E).astype(jnp.float32)
    b2 = beta.reshape(1, E).astype(jnp.float32)

    grid = (n_tok // tm,)
    ids_spec = pl.BlockSpec((tm, 1), lambda i, wid_sm: (i, 0))
    resident = lambda shp: pl.BlockSpec(shp, lambda i, wid_sm: (0, 0))

    cost = pl.CostEstimate(
        flops=int(n_tok * (10 * E + 16)),
        transcendentals=int(n_tok),
        bytes_accessed=int(n_tok * E * 4                              # word-row gather
                           + n_tok * E * jnp.dtype(out_dtype).itemsize  # output write
                           + (P + T + 2) * E * 4                      # resident tables
                           + n_tok * 3 * 4),                          # id streams
    )

    kernel = functools.partial(
        _albert_embeddings_kernel,
        tm=tm, seq_len=S, eps=eps, pos_mode=pos_mode,
        unroll=min(gather_unroll, tm),
    )

    out = pl.pallas_call(
        kernel,
        out_shape=jax.ShapeDtypeStruct((n_tok, E), out_dtype),
        grid_spec=pltpu.PrefetchScalarGridSpec(
            num_scalar_prefetch=1,
            grid=grid,
            in_specs=[
                ids_spec,                            # position ids
                ids_spec,                            # token-type ids
                resident((P, E)),                    # position table (VMEM-resident)
                resident((T, E)),                    # token-type table (VMEM-resident)
                resident((1, E)),                    # gamma
                resident((1, E)),                    # beta
                pl.BlockSpec(memory_space=pl.ANY),   # word table stays in HBM
            ],
            out_specs=pl.BlockSpec((tm, E), lambda i, wid_sm: (i, 0)),
            scratch_shapes=[
                pltpu.VMEM((2, tm, E), jnp.float32),  # double-buffered gather dst
                pltpu.SemaphoreType.DMA((2,)),        # one DMA sem per slot
            ],
        ),
        compiler_params=pltpu.CompilerParams(
            # Cross-step scratch carry (slot i%2 is filled at step i-1) requires
            # sequential grid execution, hence "arbitrary" (not "parallel").
            dimension_semantics=("arbitrary",),
            # NOTE(v7x): for much larger E (>= ~1024) with tm ~ 1024 the resident
            # (P, E) table + out double buffers approach the 32 MiB scoped VMEM
            # default; set vmem_limit_bytes here if this kernel is reused there.
        ),
        cost_estimate=cost,
    )(wid, pid, tid,
      pos_table.astype(jnp.float32), type_table.astype(jnp.float32),
      g2, b2, word_table.astype(jnp.float32))

    return out.reshape(B, S, E)


def _reference(input_ids, word_table, pos_table, type_table, gamma, beta,
               token_type_ids=None, position_ids=None, eps=1e-5):
    B, S = input_ids.shape
    if position_ids is None:
        position_ids = jnp.broadcast_to(
            jnp.arange(S, dtype=jnp.int32)[None, :], (B, S))
    if token_type_ids is None:
        token_type_ids = jnp.zeros_like(input_ids)
    x = (word_table[input_ids]
         + pos_table[position_ids]
         + type_table[token_type_ids])
    u = jnp.mean(x, axis=-1, keepdims=True)
    s = jnp.mean((x - u) ** 2, axis=-1, keepdims=True)
    return (x - u) / jnp.sqrt(s + eps) * gamma + beta


if __name__ == "__main__":
    # Small synthetic ALBERT config.
    vocab_size = 128
    max_position_embeddings = 64
    type_vocab_size = 2
    embedding_size = 128
    B, S = 2, 16

    key = jax.random.PRNGKey(0)
    k_w, k_p, k_t, k_ids, k_tt, k_pp, k_g, k_b = jax.random.split(key, 8)

    word_table = 0.02 * jax.random.normal(k_w, (vocab_size, embedding_size), jnp.float32)
    word_table = word_table.at[0].set(0.0)   # nn.Embedding(padding_idx=0)
    pos_table = 0.02 * jax.random.normal(
        k_p, (max_position_embeddings, embedding_size), jnp.float32)
    type_table = 0.02 * jax.random.normal(
        k_t, (type_vocab_size, embedding_size), jnp.float32)
    gamma = 1.0 + 0.1 * jax.random.normal(k_g, (embedding_size,), jnp.float32)
    beta = 0.05 * jax.random.normal(k_b, (embedding_size,), jnp.float32)

    input_ids = jax.random.randint(k_ids, (B, S), 0, vocab_size, dtype=jnp.int32)
    token_type_ids = jax.random.randint(k_tt, (B, S), 0, type_vocab_size, dtype=jnp.int32)
    custom_position_ids = jax.random.randint(
        k_pp, (B, S), 0, max_position_embeddings, dtype=jnp.int32)

    # (1) defaults, small tile -> 4 grid steps: exercises cross-step double-buffered
    #     gather (prime + steady state + last step) and the contiguous-slice path.
    out1 = jax.block_until_ready(
        albert_embeddings(input_ids, word_table, pos_table, type_table,
                          gamma, beta, tm=8))
    ref1 = _reference(input_ids, word_table, pos_table, type_table, gamma, beta)
    assert out1.shape == (B, S, embedding_size)
    assert jnp.allclose(out1, ref1, atol=1e-5, rtol=1e-5), "mismatch (case 1)"

    # (2) explicit token_type_ids, auto tile (tm = 32 > S): tiled-repeat position path.
    out2 = jax.block_until_ready(
        albert_embeddings(input_ids, word_table, pos_table, type_table,
                          gamma, beta, token_type_ids=token_type_ids))
    ref2 = _reference(input_ids, word_table, pos_table, type_table, gamma, beta,
                      token_type_ids=token_type_ids)
    assert jnp.allclose(out2, ref2, atol=1e-5, rtol=1e-5), "mismatch (case 2)"

    # (3) explicit position_ids: exact one-hot fallback path, 2 grid steps.
    out3 = jax.block_until_ready(
        albert_embeddings(input_ids, word_table, pos_table, type_table,
                          gamma, beta, token_type_ids=token_type_ids,
                          position_ids=custom_position_ids, tm=16))
    ref3 = _reference(input_ids, word_table, pos_table, type_table, gamma, beta,
                      token_type_ids=token_type_ids,
                      position_ids=custom_position_ids)
    assert jnp.allclose(out3, ref3, atol=1e-5, rtol=1e-5), "mismatch (case 3)"

    print("KERNEL_OK")
</pallas_src>

<mosaic_0001>
module attributes {stable_mosaic.version = 11 : i64} {
  func.func @_albert_embeddings_kernel(%arg0: i32, %arg1: memref<32xi32, #tpu.memory_space<smem>>, %arg2: memref<8x1xi32, #tpu.memory_space<vmem>>, %arg3: memref<8x1xi32, #tpu.memory_space<vmem>>, %arg4: memref<64x128xf32, #tpu.memory_space<vmem>>, %arg5: memref<2x128xf32, #tpu.memory_space<vmem>>, %arg6: memref<1x128xf32, #tpu.memory_space<vmem>>, %arg7: memref<1x128xf32, #tpu.memory_space<vmem>>, %arg8: memref<128x128xf32, #tpu.memory_space<any>>, %arg9: memref<8x128xf32, #tpu.memory_space<vmem>>, %arg10: memref<2x8x128xf32, #tpu.memory_space<vmem>>, %arg11: memref<2x!tpu.dma_semaphore, #tpu.memory_space<semaphore_mem>>) attributes {dimension_semantics = [#tpu.dimension_semantics<arbitrary>], iteration_bounds = array<i64: 4>, scalar_prefetch = 1 : i64, scratch_operands = 2 : i64, tpu.core_type = #tpu.core_type<tc>, window_params = [{transform_indices = @transform_0, window_bounds = array<i64: 8, 1>}, {transform_indices = @transform_1, window_bounds = array<i64: 8, 1>}, {pipeline_mode = #tpu.pipeline_mode<synchronous>, transform_indices = @transform_2, window_bounds = array<i64: 64, 128>}, {pipeline_mode = #tpu.pipeline_mode<synchronous>, transform_indices = @transform_3, window_bounds = array<i64: 2, 128>}, {pipeline_mode = #tpu.pipeline_mode<synchronous>, transform_indices = @transform_4, window_bounds = array<i64: 1, 128>}, {pipeline_mode = #tpu.pipeline_mode<synchronous>, transform_indices = @transform_5, window_bounds = array<i64: 1, 128>}, {}, {transform_indices = @transform_7, window_bounds = array<i64: 8, 128>}]} {
    %c2_i32 = arith.constant 2 : i32
    %0 = arith.remsi %arg0, %c2_i32 : i32
    %c0_i32 = arith.constant 0 : i32
    %1 = arith.cmpi eq, %arg0, %c0_i32 : i32
    %2 = arith.extui %1 : i1 to i32
    %c0_i32_0 = arith.constant 0 : i32
    %3 = arith.cmpi ne, %2, %c0_i32_0 : i32
    scf.if %3 {
      %c0_i32_23 = arith.constant 0 : i32
      %c0_i32_24 = arith.constant 0 : i32
      %59 = arith.addi %c0_i32_24, %c0_i32_23 : i32
      %60 = arith.index_cast %59 : i32 to index
      %61 = memref.load %arg1[%60] : memref<32xi32, #tpu.memory_space<smem>>
      %c0_i32_25 = arith.constant 0 : i32
      %c0_i32_26 = arith.constant 0 : i32
      %c0_i32_27 = arith.constant 0 : i32
      %62 = tpu.memref_slice %arg8[%61, %c0_i32_27] : memref<128x128xf32, #tpu.memory_space<any>> -> memref<1x128xf32, #tpu.memory_space<any>>
      %c0_i32_28 = arith.constant 0 : i32
      %63 = tpu.memref_slice %arg10[%c0_i32_25, %c0_i32_23, %c0_i32_28] : memref<2x8x128xf32, #tpu.memory_space<vmem>> -> memref<1x1x128xf32, #tpu.memory_space<vmem>>
      %64 = tpu.memref_squeeze %63 : memref<1x1x128xf32, #tpu.memory_space<vmem>> -> memref<1x128xf32, #tpu.memory_space<vmem>>
      %65 = tpu.memref_slice %arg11[%c0_i32_26] : memref<2x!tpu.dma_semaphore, #tpu.memory_space<semaphore_mem>> -> memref<1x!tpu.dma_semaphore, #tpu.memory_space<semaphore_mem>>
      %66 = tpu.memref_squeeze %65 : memref<1x!tpu.dma_semaphore, #tpu.memory_space<semaphore_mem>> -> memref<!tpu.dma_semaphore, #tpu.memory_space<semaphore_mem>>
      tpu.enqueue_dma source(%62 : memref<1x128xf32, #tpu.memory_space<any>>) target(%64 : memref<1x128xf32, #tpu.memory_space<vmem>>) target_semaphore(%66 : memref<!tpu.dma_semaphore, #tpu.memory_space<semaphore_mem>>)
      %c1_i32_29 = arith.constant 1 : i32
      %c0_i32_30 = arith.constant 0 : i32
      %67 = arith.addi %c0_i32_30, %c1_i32_29 : i32
      %68 = arith.index_cast %67 : i32 to index
      %69 = memref.load %arg1[%68] : memref<32xi32, #tpu.memory_space<smem>>
      %c0_i32_31 = arith.constant 0 : i32
      %c0_i32_32 = arith.constant 0 : i32
      %c0_i32_33 = arith.constant 0 : i32
      %70 = tpu.memref_slice %arg8[%69, %c0_i32_33] : memref<128x128xf32, #tpu.memory_space<any>> -> memref<1x128xf32, #tpu.memory_space<any>>
      %c0_i32_34 = arith.constant 0 : i32
      %71 = tpu.memref_slice %arg10[%c0_i32_31, %c1_i32_29, %c0_i32_34] : memref<2x8x128xf32, #tpu.memory_space<vmem>> -> memref<1x1x128xf32, #tpu.memory_space<vmem>>
      %72 = tpu.memref_squeeze %71 : memref<1x1x128xf32, #tpu.memory_space<vmem>> -> memref<1x128xf32, #tpu.memory_space<vmem>>
      %73 = tpu.memref_slice %arg11[%c0_i32_32] : memref<2x!tpu.dma_semaphore, #tpu.memory_space<semaphore_mem>> -> memref<1x!tpu.dma_semaphore, #tpu.memory_space<semaphore_mem>>
      %74 = tpu.memref_squeeze %73 : memref<1x!tpu.dma_semaphore, #tpu.memory_space<semaphore_mem>> -> memref<!tpu.dma_semaphore, #tpu.memory_space<semaphore_mem>>
      tpu.enqueue_dma source(%70 : memref<1x128xf32, #tpu.memory_space<any>>) target(%72 : memref<1x128xf32, #tpu.memory_space<vmem>>) target_semaphore(%74 : memref<!tpu.dma_semaphore, #tpu.memory_space<semaphore_mem>>)
      %c2_i32_35 = arith.constant 2 : i32
      %c0_i32_36 = arith.constant 0 : i32
      %75 = arith.addi %c0_i32_36, %c2_i32_35 : i32
      %76 = arith.index_cast %75 : i32 to index
      %77 = memref.load %arg1[%76] : memref<32xi32, #tpu.memory_space<smem>>
      %c0_i32_37 = arith.constant 0 : i32
      %c0_i32_38 = arith.constant 0 : i32
      %c0_i32_39 = arith.constant 0 : i32
      %78 = tpu.memref_slice %arg8[%77, %c0_i32_39] : memref<128x128xf32, #tpu.memory_space<any>> -> memref<1x128xf32, #tpu.memory_space<any>>
      %c0_i32_40 = arith.constant 0 : i32
      %79 = tpu.memref_slice %arg10[%c0_i32_37, %c2_i32_35, %c0_i32_40] : memref<2x8x128xf32, #tpu.memory_space<vmem>> -> memref<1x1x128xf32, #tpu.memory_space<vmem>>
      %80 = tpu.memref_squeeze %79 : memref<1x1x128xf32, #tpu.memory_space<vmem>> -> memref<1x128xf32, #tpu.memory_space<vmem>>
      %81 = tpu.memref_slice %arg11[%c0_i32_38] : memref<2x!tpu.dma_semaphore, #tpu.memory_space<semaphore_mem>> -> memref<1x!tpu.dma_semaphore, #tpu.memory_space<semaphore_mem>>
      %82 = tpu.memref_squeeze %81 : memref<1x!tpu.dma_semaphore, #tpu.memory_space<semaphore_mem>> -> memref<!tpu.dma_semaphore, #tpu.memory_space<semaphore_mem>>
      tpu.enqueue_dma source(%78 : memref<1x128xf32, #tpu.memory_space<any>>) target(%80 : memref<1x128xf32, #tpu.memory_space<vmem>>) target_semaphore(%82 : memref<!tpu.dma_semaphore, #tpu.memory_space<semaphore_mem>>)
      %c3_i32 = arith.constant 3 : i32
      %c0_i32_41 = arith.constant 0 : i32
      %83 = arith.addi %c0_i32_41, %c3_i32 : i32
      %84 = arith.index_cast %83 : i32 to index
      %85 = memref.load %arg1[%84] : memref<32xi32, #tpu.memory_space<smem>>
      %c0_i32_42 = arith.constant 0 : i32
      %c0_i32_43 = arith.constant 0 : i32
      %c0_i32_44 = arith.constant 0 : i32
      %86 = tpu.memref_slice %arg8[%85, %c0_i32_44] : memref<128x128xf32, #tpu.memory_space<any>> -> memref<1x128xf32, #tpu.memory_space<any>>
      %c0_i32_45 = arith.constant 0 : i32
      %87 = tpu.memref_slice %arg10[%c0_i32_42, %c3_i32, %c0_i32_45] : memref<2x8x128xf32, #tpu.memory_space<vmem>> -> memref<1x1x128xf32, #tpu.memory_space<vmem>>
      %88 = tpu.memref_squeeze %87 : memref<1x1x128xf32, #tpu.memory_space<vmem>> -> memref<1x128xf32, #tpu.memory_space<vmem>>
      %89 = tpu.memref_slice %arg11[%c0_i32_43] : memref<2x!tpu.dma_semaphore, #tpu.memory_space<semaphore_mem>> -> memref<1x!tpu.dma_semaphore, #tpu.memory_space<semaphore_mem>>
      %90 = tpu.memref_squeeze %89 : memref<1x!tpu.dma_semaphore, #tpu.memory_space<semaphore_mem>> -> memref<!tpu.dma_semaphore, #tpu.memory_space<semaphore_mem>>
      tpu.enqueue_dma source(%86 : memref<1x128xf32, #tpu.memory_space<any>>) target(%88 : memref<1x128xf32, #tpu.memory_space<vmem>>) target_semaphore(%90 : memref<!tpu.dma_semaphore, #tpu.memory_space<semaphore_mem>>)
      %c4_i32_46 = arith.constant 4 : i32
      %c0_i32_47 = arith.constant 0 : i32
      %91 = arith.addi %c0_i32_47, %c4_i32_46 : i32
      %92 = arith.index_cast %91 : i32 to index
      %93 = memref.load %arg1[%92] : memref<32xi32, #tpu.memory_space<smem>>
      %c0_i32_48 = arith.constant 0 : i32
      %c0_i32_49 = arith.constant 0 : i32
      %c0_i32_50 = arith.constant 0 : i32
      %94 = tpu.memref_slice %arg8[%93, %c0_i32_50] : memref<128x128xf32, #tpu.memory_space<any>> -> memref<1x128xf32, #tpu.memory_space<any>>
      %c0_i32_51 = arith.constant 0 : i32
      %95 = tpu.memref_slice %arg10[%c0_i32_48, %c4_i32_46, %c0_i32_51] : memref<2x8x128xf32, #tpu.memory_space<vmem>> -> memref<1x1x128xf32, #tpu.memory_space<vmem>>
      %96 = tpu.memref_squeeze %95 : memref<1x1x128xf32, #tpu.memory_space<vmem>> -> memref<1x128xf32, #tpu.memory_space<vmem>>
      %97 = tpu.memref_slice %arg11[%c0_i32_49] : memref<2x!tpu.dma_semaphore, #tpu.memory_space<semaphore_mem>> -> memref<1x!tpu.dma_semaphore, #tpu.memory_space<semaphore_mem>>
      %98 = tpu.memref_squeeze %97 : memref<1x!tpu.dma_semaphore, #tpu.memory_space<semaphore_mem>> -> memref<!tpu.dma_semaphore, #tpu.memory_space<semaphore_mem>>
      tpu.enqueue_dma source(%94 : memref<1x128xf32, #tpu.memory_space<any>>) target(%96 : memref<1x128xf32, #tpu.memory_space<vmem>>) target_semaphore(%98 : memref<!tpu.dma_semaphore, #tpu.memory_space<semaphore_mem>>)
      %c5_i32 = arith.constant 5 : i32
      %c0_i32_52 = arith.constant 0 : i32
      %99 = arith.addi %c0_i32_52, %c5_i32 : i32
      %100 = arith.index_cast %99 : i32 to index
      %101 = memref.load %arg1[%100] : memref<32xi32, #tpu.memory_space<smem>>
      %c0_i32_53 = arith.constant 0 : i32
      %c0_i32_54 = arith.constant 0 : i32
      %c0_i32_55 = arith.constant 0 : i32
      %102 = tpu.memref_slice %arg8[%101, %c0_i32_55] : memref<128x128xf32, #tpu.memory_space<any>> -> memref<1x128xf32, #tpu.memory_space<any>>
      %c0_i32_56 = arith.constant 0 : i32
      %103 = tpu.memref_slice %arg10[%c0_i32_53, %c5_i32, %c0_i32_56] : memref<2x8x128xf32, #tpu.memory_space<vmem>> -> memref<1x1x128xf32, #tpu.memory_space<vmem>>
      %104 = tpu.memref_squeeze %103 : memref<1x1x128xf32, #tpu.memory_space<vmem>> -> memref<1x128xf32, #tpu.memory_space<vmem>>
      %105 = tpu.memref_slice %arg11[%c0_i32_54] : memref<2x!tpu.dma_semaphore, #tpu.memory_space<semaphore_mem>> -> memref<1x!tpu.dma_semaphore, #tpu.memory_space<semaphore_mem>>
      %106 = tpu.memref_squeeze %105 : memref<1x!tpu.dma_semaphore, #tpu.memory_space<semaphore_mem>> -> memref<!tpu.dma_semaphore, #tpu.memory_space<semaphore_mem>>
      tpu.enqueue_dma source(%102 : memref<1x128xf32, #tpu.memory_space<any>>) target(%104 : memref<1x128xf32, #tpu.memory_space<vmem>>) target_semaphore(%106 : memref<!tpu.dma_semaphore, #tpu.memory_space<semaphore_mem>>)
      %c6_i32 = arith.constant 6 : i32
      %c0_i32_57 = arith.constant 0 : i32
      %107 = arith.addi %c0_i32_57, %c6_i32 : i32
      %108 = arith.index_cast %107 : i32 to index
      %109 = memref.load %arg1[%108] : memref<32xi32, #tpu.memory_space<smem>>
      %c0_i32_58 = arith.constant 0 : i32
      %c0_i32_59 = arith.constant 0 : i32
      %c0_i32_60 = arith.constant 0 : i32
      %110 = tpu.memref_slice %arg8[%109, %c0_i32_60] : memref<128x128xf32, #tpu.memory_space<any>> -> memref<1x128xf32, #tpu.memory_space<any>>
      %c0_i32_61 = arith.constant 0 : i32
      %111 = tpu.memref_slice %arg10[%c0_i32_58, %c6_i32, %c0_i32_61] : memref<2x8x128xf32, #tpu.memory_space<vmem>> -> memref<1x1x128xf32, #tpu.memory_space<vmem>>
      %112 = tpu.memref_squeeze %111 : memref<1x1x128xf32, #tpu.memory_space<vmem>> -> memref<1x128xf32, #tpu.memory_space<vmem>>
      %113 = tpu.memref_slice %arg11[%c0_i32_59] : memref<2x!tpu.dma_semaphore, #tpu.memory_space<semaphore_mem>> -> memref<1x!tpu.dma_semaphore, #tpu.memory_space<semaphore_mem>>
      %114 = tpu.memref_squeeze %113 : memref<1x!tpu.dma_semaphore, #tpu.memory_space<semaphore_mem>> -> memref<!tpu.dma_semaphore, #tpu.memory_space<semaphore_mem>>
      tpu.enqueue_dma source(%110 : memref<1x128xf32, #tpu.memory_space<any>>) target(%112 : memref<1x128xf32, #tpu.memory_space<vmem>>) target_semaphore(%114 : memref<!tpu.dma_semaphore, #tpu.memory_space<semaphore_mem>>)
      %c7_i32 = arith.constant 7 : i32
      %c0_i32_62 = arith.constant 0 : i32
      %115 = arith.addi %c0_i32_62, %c7_i32 : i32
      %116 = arith.index_cast %115 : i32 to index
      %117 = memref.load %arg1[%116] : memref<32xi32, #tpu.memory_space<smem>>
      %c0_i32_63 = arith.constant 0 : i32
      %c0_i32_64 = arith.constant 0 : i32
      %c0_i32_65 = arith.constant 0 : i32
      %118 = tpu.memref_slice %arg8[%117, %c0_i32_65] : memref<128x128xf32, #tpu.memory_space<any>> -> memref<1x128xf32, #tpu.memory_space<any>>
      %c0_i32_66 = arith.constant 0 : i32
      %119 = tpu.memref_slice %arg10[%c0_i32_63, %c7_i32, %c0_i32_66] : memref<2x8x128xf32, #tpu.memory_space<vmem>> -> memref<1x1x128xf32, #tpu.memory_space<vmem>>
      %120 = tpu.memref_squeeze %119 : memref<1x1x128xf32, #tpu.memory_space<vmem>> -> memref<1x128xf32, #tpu.memory_space<vmem>>
      %121 = tpu.memref_slice %arg11[%c0_i32_64] : memref<2x!tpu.dma_semaphore, #tpu.memory_space<semaphore_mem>> -> memref<1x!tpu.dma_semaphore, #tpu.memory_space<semaphore_mem>>
      %122 = tpu.memref_squeeze %121 : memref<1x!tpu.dma_semaphore, #tpu.memory_space<semaphore_mem>> -> memref<!tpu.dma_semaphore, #tpu.memory_space<semaphore_mem>>
      tpu.enqueue_dma source(%118 : memref<1x128xf32, #tpu.memory_space<any>>) target(%120 : memref<1x128xf32, #tpu.memory_space<vmem>>) target_semaphore(%122 : memref<!tpu.dma_semaphore, #tpu.memory_space<semaphore_mem>>)
      %c8_i32_67 = arith.constant 8 : i32
    } else {
    }
    %c1_i32 = arith.constant 1 : i32
    %4 = arith.addi %arg0, %c1_i32 : i32
    %c4_i32 = arith.constant 4 : i32
    %5 = arith.cmpi slt, %4, %c4_i32 : i32
    %6 = arith.extui %5 : i1 to i32
    %c0_i32_1 = arith.constant 0 : i32
    %7 = arith.cmpi ne, %6, %c0_i32_1 : i32
    scf.if %7 {
      %c1_i32_23 = arith.constant 1 : i32
      %59 = arith.addi %arg0, %c1_i32_23 : i32
      %c1_i32_24 = arith.constant 1 : i32
      %60 = arith.addi %arg0, %c1_i32_24 : i32
      %c2_i32_25 = arith.constant 2 : i32
      %61 = arith.remsi %60, %c2_i32_25 : i32
      %c8_i32_26 = arith.constant 8 : i32
      %62 = arith.muli %59, %c8_i32_26 : i32
      %c0_i32_27 = arith.constant 0 : i32
      %63 = arith.addi %62, %c0_i32_27 : i32
      %64 = arith.index_cast %63 : i32 to index
      %65 = memref.load %arg1[%64] : memref<32xi32, #tpu.memory_space<smem>>
      %c0_i32_28 = arith.constant 0 : i32
      %66 = tpu.memref_slice %arg8[%65, %c0_i32_28] : memref<128x128xf32, #tpu.memory_space<any>> -> memref<1x128xf32, #tpu.memory_space<any>>
      %c0_i32_29 = arith.constant 0 : i32
      %67 = tpu.memref_slice %arg10[%61, %c0_i32_27, %c0_i32_29] : memref<2x8x128xf32, #tpu.memory_space<vmem>> -> memref<1x1x128xf32, #tpu.memory_space<vmem>>
      %68 = tpu.memref_squeeze %67 : memref<1x1x128xf32, #tpu.memory_space<vmem>> -> memref<1x128xf32, #tpu.memory_space<vmem>>
      %69 = tpu.memref_slice %arg11[%61] : memref<2x!tpu.dma_semaphore, #tpu.memory_space<semaphore_mem>> -> memref<1x!tpu.dma_semaphore, #tpu.memory_space<semaphore_mem>>
      %70 = tpu.memref_squeeze %69 : memref<1x!tpu.dma_semaphore, #tpu.memory_space<semaphore_mem>> -> memref<!tpu.dma_semaphore, #tpu.memory_space<semaphore_mem>>
      tpu.enqueue_dma source(%66 : memref<1x128xf32, #tpu.memory_space<any>>) target(%68 : memref<1x128xf32, #tpu.memory_space<vmem>>) target_semaphore(%70 : memref<!tpu.dma_semaphore, #tpu.memory_space<semaphore_mem>>)
      %c1_i32_30 = arith.constant 1 : i32
      %71 = arith.addi %62, %c1_i32_30 : i32
      %72 = arith.index_cast %71 : i32 to index
      %73 = memref.load %arg1[%72] : memref<32xi32, #tpu.memory_space<smem>>
      %c0_i32_31 = arith.constant 0 : i32
      %74 = tpu.memref_slice %arg8[%73, %c0_i32_31] : memref<128x128xf32, #tpu.memory_space<any>> -> memref<1x128xf32, #tpu.memory_space<any>>
      %c0_i32_32 = arith.constant 0 : i32
      %75 = tpu.memref_slice %arg10[%61, %c1_i32_30, %c0_i32_32] : memref<2x8x128xf32, #tpu.memory_space<vmem>> -> memref<1x1x128xf32, #tpu.memory_space<vmem>>
      %76 = tpu.memref_squeeze %75 : memref<1x1x128xf32, #tpu.memory_space<vmem>> -> memref<1x128xf32, #tpu.memory_space<vmem>>
      %77 = tpu.memref_slice %arg11[%61] : memref<2x!tpu.dma_semaphore, #tpu.memory_space<semaphore_mem>> -> memref<1x!tpu.dma_semaphore, #tpu.memory_space<semaphore_mem>>
      %78 = tpu.memref_squeeze %77 : memref<1x!tpu.dma_semaphore, #tpu.memory_space<semaphore_mem>> -> memref<!tpu.dma_semaphore, #tpu.memory_space<semaphore_mem>>
      tpu.enqueue_dma source(%74 : memref<1x128xf32, #tpu.memory_space<any>>) target(%76 : memref<1x128xf32, #tpu.memory_space<vmem>>) target_semaphore(%78 : memref<!tpu.dma_semaphore, #tpu.memory_space<semaphore_mem>>)
      %c2_i32_33 = arith.constant 2 : i32
      %79 = arith.addi %62, %c2_i32_33 : i32
      %80 = arith.index_cast %79 : i32 to index
      %81 = memref.load %arg1[%80] : memref<32xi32, #tpu.memory_space<smem>>
      %c0_i32_34 = arith.constant 0 : i32
      %82 = tpu.memref_slice %arg8[%81, %c0_i32_34] : memref<128x128xf32, #tpu.memory_space<any>> -> memref<1x128xf32, #tpu.memory_space<any>>
      %c0_i32_35 = arith.constant 0 : i32
      %83 = tpu.memref_slice %arg10[%61, %c2_i32_33, %c0_i32_35] : memref<2x8x128xf32, #tpu.memory_space<vmem>> -> memref<1x1x128xf32, #tpu.memory_space<vmem>>
      %84 = tpu.memref_squeeze %83 : memref<1x1x128xf32, #tpu.memory_space<vmem>> -> memref<1x128xf32, #tpu.memory_space<vmem>>
      %85 = tpu.memref_slice %arg11[%61] : memref<2x!tpu.dma_semaphore, #tpu.memory_space<semaphore_mem>> -> memref<1x!tpu.dma_semaphore, #tpu.memory_space<semaphore_mem>>
      %86 = tpu.memref_squeeze %85 : memref<1x!tpu.dma_semaphore, #tpu.memory_space<semaphore_mem>> -> memref<!tpu.dma_semaphore, #tpu.memory_space<semaphore_mem>>
      tpu.enqueue_dma source(%82 : memref<1x128xf32, #tpu.memory_space<any>>) target(%84 : memref<1x128xf32, #tpu.memory_space<vmem>>) target_semaphore(%86 : memref<!tpu.dma_semaphore, #tpu.memory_space<semaphore_mem>>)
      %c3_i32 = arith.constant 3 : i32
      %87 = arith.addi %62, %c3_i32 : i32
      %88 = arith.index_cast %87 : i32 to index
      %89 = memref.load %arg1[%88] : memref<32xi32, #tpu.memory_space<smem>>
      %c0_i32_36 = arith.constant 0 : i32
      %90 = tpu.memref_slice %arg8[%89, %c0_i32_36] : memref<128x128xf32, #tpu.memory_space<any>> -> memref<1x128xf32, #tpu.memory_space<any>>
      %c0_i32_37 = arith.constant 0 : i32
      %91 = tpu.memref_slice %arg10[%61, %c3_i32, %c0_i32_37] : memref<2x8x128xf32, #tpu.memory_space<vmem>> -> memref<1x1x128xf32, #tpu.memory_space<vmem>>
      %92 = tpu.memref_squeeze %91 : memref<1x1x128xf32, #tpu.memory_space<vmem>> -> memref<1x128xf32, #tpu.memory_space<vmem>>
      %93 = tpu.memref_slice %arg11[%61] : memref<2x!tpu.dma_semaphore, #tpu.memory_space<semaphore_mem>> -> memref<1x!tpu.dma_semaphore, #tpu.memory_space<semaphore_mem>>
      %94 = tpu.memref_squeeze %93 : memref<1x!tpu.dma_semaphore, #tpu.memory_space<semaphore_mem>> -> memref<!tpu.dma_semaphore, #tpu.memory_space<semaphore_mem>>
      tpu.enqueue_dma source(%90 : memref<1x128xf32, #tpu.memory_space<any>>) target(%92 : memref<1x128xf32, #tpu.memory_space<vmem>>) target_semaphore(%94 : memref<!tpu.dma_semaphore, #tpu.memory_space<semaphore_mem>>)
      %c4_i32_38 = arith.constant 4 : i32
      %95 = arith.addi %62, %c4_i32_38 : i32
      %96 = arith.index_cast %95 : i32 to index
      %97 = memref.load %arg1[%96] : memref<32xi32, #tpu.memory_space<smem>>
      %c0_i32_39 = arith.constant 0 : i32
      %98 = tpu.memref_slice %arg8[%97, %c0_i32_39] : memref<128x128xf32, #tpu.memory_space<any>> -> memref<1x128xf32, #tpu.memory_space<any>>
      %c0_i32_40 = arith.constant 0 : i32
      %99 = tpu.memref_slice %arg10[%61, %c4_i32_38, %c0_i32_40] : memref<2x8x128xf32, #tpu.memory_space<vmem>> -> memref<1x1x128xf32, #tpu.memory_space<vmem>>
      %100 = tpu.memref_squeeze %99 : memref<1x1x128xf32, #tpu.memory_space<vmem>> -> memref<1x128xf32, #tpu.memory_space<vmem>>
      %101 = tpu.memref_slice %arg11[%61] : memref<2x!tpu.dma_semaphore, #tpu.memory_space<semaphore_mem>> -> memref<1x!tpu.dma_semaphore, #tpu.memory_space<semaphore_mem>>
      %102 = tpu.memref_squeeze %101 : memref<1x!tpu.dma_semaphore, #tpu.memory_space<semaphore_mem>> -> memref<!tpu.dma_semaphore, #tpu.memory_space<semaphore_mem>>
      tpu.enqueue_dma source(%98 : memref<1x128xf32, #tpu.memory_space<any>>) target(%100 : memref<1x128xf32, #tpu.memory_space<vmem>>) target_semaphore(%102 : memref<!tpu.dma_semaphore, #tpu.memory_space<semaphore_mem>>)
      %c5_i32 = arith.constant 5 : i32
      %103 = arith.addi %62, %c5_i32 : i32
      %104 = arith.index_cast %103 : i32 to index
      %105 = memref.load %arg1[%104] : memref<32xi32, #tpu.memory_space<smem>>
      %c0_i32_41 = arith.constant 0 : i32
      %106 = tpu.memref_slice %arg8[%105, %c0_i32_41] : memref<128x128xf32, #tpu.memory_space<any>> -> memref<1x128xf32, #tpu.memory_space<any>>
      %c0_i32_42 = arith.constant 0 : i32
      %107 = tpu.memref_slice %arg10[%61, %c5_i32, %c0_i32_42] : memref<2x8x128xf32, #tpu.memory_space<vmem>> -> memref<1x1x128xf32, #tpu.memory_space<vmem>>
      %108 = tpu.memref_squeeze %107 : memref<1x1x128xf32, #tpu.memory_space<vmem>> -> memref<1x128xf32, #tpu.memory_space<vmem>>
      %109 = tpu.memref_slice %arg11[%61] : memref<2x!tpu.dma_semaphore, #tpu.memory_space<semaphore_mem>> -> memref<1x!tpu.dma_semaphore, #tpu.memory_space<semaphore_mem>>
      %110 = tpu.memref_squeeze %109 : memref<1x!tpu.dma_semaphore, #tpu.memory_space<semaphore_mem>> -> memref<!tpu.dma_semaphore, #tpu.memory_space<semaphore_mem>>
      tpu.enqueue_dma source(%106 : memref<1x128xf32, #tpu.memory_space<any>>) target(%108 : memref<1x128xf32, #tpu.memory_space<vmem>>) target_semaphore(%110 : memref<!tpu.dma_semaphore, #tpu.memory_space<semaphore_mem>>)
      %c6_i32 = arith.constant 6 : i32
      %111 = arith.addi %62, %c6_i32 : i32
      %112 = arith.index_cast %111 : i32 to index
      %113 = memref.load %arg1[%112] : memref<32xi32, #tpu.memory_space<smem>>
      %c0_i32_43 = arith.constant 0 : i32
      %114 = tpu.memref_slice %arg8[%113, %c0_i32_43] : memref<128x128xf32, #tpu.memory_space<any>> -> memref<1x128xf32, #tpu.memory_space<any>>
      %c0_i32_44 = arith.constant 0 : i32
      %115 = tpu.memref_slice %arg10[%61, %c6_i32, %c0_i32_44] : memref<2x8x128xf32, #tpu.memory_space<vmem>> -> memref<1x1x128xf32, #tpu.memory_space<vmem>>
      %116 = tpu.memref_squeeze %115 : memref<1x1x128xf32, #tpu.memory_space<vmem>> -> memref<1x128xf32, #tpu.memory_space<vmem>>
      %117 = tpu.memref_slice %arg11[%61] : memref<2x!tpu.dma_semaphore, #tpu.memory_space<semaphore_mem>> -> memref<1x!tpu.dma_semaphore, #tpu.memory_space<semaphore_mem>>
      %118 = tpu.memref_squeeze %117 : memref<1x!tpu.dma_semaphore, #tpu.memory_space<semaphore_mem>> -> memref<!tpu.dma_semaphore, #tpu.memory_space<semaphore_mem>>
      tpu.enqueue_dma source(%114 : memref<1x128xf32, #tpu.memory_space<any>>) target(%116 : memref<1x128xf32, #tpu.memory_space<vmem>>) target_semaphore(%118 : memref<!tpu.dma_semaphore, #tpu.memory_space<semaphore_mem>>)
      %c7_i32 = arith.constant 7 : i32
      %119 = arith.addi %62, %c7_i32 : i32
      %120 = arith.index_cast %119 : i32 to index
      %121 = memref.load %arg1[%120] : memref<32xi32, #tpu.memory_space<smem>>
      %c0_i32_45 = arith.constant 0 : i32
      %122 = tpu.memref_slice %arg8[%121, %c0_i32_45] : memref<128x128xf32, #tpu.memory_space<any>> -> memref<1x128xf32, #tpu.memory_space<any>>
      %c0_i32_46 = arith.constant 0 : i32
      %123 = tpu.memref_slice %arg10[%61, %c7_i32, %c0_i32_46] : memref<2x8x128xf32, #tpu.memory_space<vmem>> -> memref<1x1x128xf32, #tpu.memory_space<vmem>>
      %124 = tpu.memref_squeeze %123 : memref<1x1x128xf32, #tpu.memory_space<vmem>> -> memref<1x128xf32, #tpu.memory_space<vmem>>
      %125 = tpu.memref_slice %arg11[%61] : memref<2x!tpu.dma_semaphore, #tpu.memory_space<semaphore_mem>> -> memref<1x!tpu.dma_semaphore, #tpu.memory_space<semaphore_mem>>
      %126 = tpu.memref_squeeze %125 : memref<1x!tpu.dma_semaphore, #tpu.memory_space<semaphore_mem>> -> memref<!tpu.dma_semaphore, #tpu.memory_space<semaphore_mem>>
      tpu.enqueue_dma source(%122 : memref<1x128xf32, #tpu.memory_space<any>>) target(%124 : memref<1x128xf32, #tpu.memory_space<vmem>>) target_semaphore(%126 : memref<!tpu.dma_semaphore, #tpu.memory_space<semaphore_mem>>)
      %c8_i32_47 = arith.constant 8 : i32
    } else {
    }
    %c0_i32_2 = arith.constant 0 : i32
    %c0_i32_3 = arith.constant 0 : i32
    %8 = tpu.memref_slice %arg8[%c0_i32_2, %c0_i32_3] : memref<128x128xf32, #tpu.memory_space<any>> -> memref<8x128xf32, #tpu.memory_space<any>>
    %c0_i32_4 = arith.constant 0 : i32
    %c0_i32_5 = arith.constant 0 : i32
    %9 = tpu.memref_slice %arg10[%0, %c0_i32_4, %c0_i32_5] : memref<2x8x128xf32, #tpu.memory_space<vmem>> -> memref<1x8x128xf32, #tpu.memory_space<vmem>>
    %10 = tpu.memref_squeeze %9 : memref<1x8x128xf32, #tpu.memory_space<vmem>> -> memref<8x128xf32, #tpu.memory_space<vmem>>
    %11 = tpu.memref_slice %arg11[%0] : memref<2x!tpu.dma_semaphore, #tpu.memory_space<semaphore_mem>> -> memref<1x!tpu.dma_semaphore, #tpu.memory_space<semaphore_mem>>
    %12 = tpu.memref_squeeze %11 : memref<1x!tpu.dma_semaphore, #tpu.memory_space<semaphore_mem>> -> memref<!tpu.dma_semaphore, #tpu.memory_space<semaphore_mem>>
    tpu.wait_dma2 semaphore(%12 : memref<!tpu.dma_semaphore, #tpu.memory_space<semaphore_mem>>) src(%8 : memref<8x128xf32, #tpu.memory_space<any>>) dst(%10 : memref<8x128xf32, #tpu.memory_space<vmem>>)
    %13 = arith.index_cast %0 : i32 to index
    %c0 = arith.constant 0 : index
    %c0_6 = arith.constant 0 : index
    %14 = vector.load %arg10[%13, %c0, %c0_6] : memref<2x8x128xf32, #tpu.memory_space<vmem>>, vector<1x8x128xf32>
    %15 = vector.shape_cast %14 : vector<1x8x128xf32> to vector<8x128xf32>
    %c8_i32 = arith.constant 8 : i32
    %16 = arith.muli %arg0, %c8_i32 : i32
    %c16_i32 = arith.constant 16 : i32
    %17 = arith.remsi %16, %c16_i32 : i32
    %18 = tpu.assume_multiple %17, 8 : i32
    %19 = arith.index_cast %18 : i32 to index
    %c0_7 = arith.constant 0 : index
    %20 = vector.load %arg4[%19, %c0_7] : memref<64x128xf32, #tpu.memory_space<vmem>>, vector<8x128xf32>
    %c0_8 = arith.constant 0 : index
    %c0_9 = arith.constant 0 : index
    %21 = vector.load %arg3[%c0_8, %c0_9] : memref<8x1xi32, #tpu.memory_space<vmem>>, vector<8x1xi32>
    %c0_10 = arith.constant 0 : index
    %c0_11 = arith.constant 0 : index
    %22 = vector.load %arg5[%c0_10, %c0_11] : memref<2x128xf32, #tpu.memory_space<vmem>>, vector<2x128xf32>
    %c0_i32_12 = arith.constant 0 : i32
    %23 = vector.broadcast %c0_i32_12 : i32 to vector<8x1xi32>
    %24 = arith.cmpi eq, %21, %23 : vector<8x1xi32>
    %25 = vector.extract_strided_slice %22 {offsets = [0, 0], sizes = [1, 128], strides = [1, 1]} : vector<2x128xf32> to vector<1x128xf32>
    %26 = vector.extract_strided_slice %22 {offsets = [1, 0], sizes = [1, 128], strides = [1, 1]} : vector<2x128xf32> to vector<1x128xf32>
    %27 = vector.shape_cast %24 : vector<8x1xi1> to vector<8x1xi1>
    %28 = vector.broadcast %27 : vector<8x1xi1> to vector<8x128xi1>
    %29 = vector.shape_cast %25 : vector<1x128xf32> to vector<1x128xf32>
    %30 = vector.broadcast %29 : vector<1x128xf32> to vector<8x128xf32>
    %31 = vector.shape_cast %26 : vector<1x128xf32> to vector<1x128xf32>
    %32 = vector.broadcast %31 : vector<1x128xf32> to vector<8x128xf32>
    %33 = arith.select %28, %30, %32 : vector<8x128xi1>, vector<8x128xf32>
    %34 = arith.addf %15, %20 : vector<8x128xf32>
    %35 = arith.addf %34, %33 : vector<8x128xf32>
    %cst = arith.constant dense<0.000000e+00> : vector<8xf32>
    %36 = vector.multi_reduction <add>, %35, %cst [1] : vector<8x128xf32> to vector<8xf32>
    %37 = vector.shape_cast %36 : vector<8xf32> to vector<8x1xf32>
    %cst_13 = arith.constant 7.812500e-03 : f32
    %38 = vector.broadcast %cst_13 : f32 to vector<8x1xf32>
    %39 = arith.mulf %37, %38 : vector<8x1xf32>
    %40 = vector.broadcast %39 : vector<8x1xf32> to vector<8x128xf32>
    %41 = arith.subf %35, %40 : vector<8x128xf32>
    %42 = arith.mulf %41, %41 : vector<8x128xf32>
    %cst_14 = arith.constant dense<0.000000e+00> : vector<8xf32>
    %43 = vector.multi_reduction <add>, %42, %cst_14 [1] : vector<8x128xf32> to vector<8xf32>
    %44 = vector.shape_cast %43 : vector<8xf32> to vector<8x1xf32>
    %cst_15 = arith.constant 7.812500e-03 : f32
    %45 = vector.broadcast %cst_15 : f32 to vector<8x1xf32>
    %46 = arith.mulf %44, %45 : vector<8x1xf32>
    %cst_16 = arith.constant 9.99999974E-6 : f32
    %47 = vector.broadcast %cst_16 : f32 to vector<8x1xf32>
    %48 = arith.addf %46, %47 : vector<8x1xf32>
    %49 = math.rsqrt %48 : vector<8x1xf32>
    %50 = vector.broadcast %49 : vector<8x1xf32> to vector<8x128xf32>
    %51 = arith.mulf %41, %50 : vector<8x128xf32>
    %c0_17 = arith.constant 0 : index
    %c0_18 = arith.constant 0 : index
    %52 = vector.load %arg6[%c0_17, %c0_18] : memref<1x128xf32, #tpu.memory_space<vmem>>, vector<1x128xf32>
    %53 = vector.broadcast %52 : vector<1x128xf32> to vector<8x128xf32>
    %54 = arith.mulf %51, %53 : vector<8x128xf32>
    %c0_19 = arith.constant 0 : index
    %c0_20 = arith.constant 0 : index
    %55 = vector.load %arg7[%c0_19, %c0_20] : memref<1x128xf32, #tpu.memory_space<vmem>>, vector<1x128xf32>
    %56 = vector.broadcast %55 : vector<1x128xf32> to vector<8x128xf32>
    %57 = arith.addf %54, %56 : vector<8x128xf32>
    %c0_21 = arith.constant 0 : index
    %c0_22 = arith.constant 0 : index
    %58 = vector.load %arg9[%c0_21, %c0_22] : memref<8x128xf32, #tpu.memory_space<vmem>>, vector<8x128xf32>
    tpu.vector_store %arg9[%c0_21, %c0_22], %57 {strides = array<i32>} : memref<8x128xf32, #tpu.memory_space<vmem>>, vector<8x128xf32>,
    return
  }
  func.func @transform_0(%arg0: i32, %arg1: memref<32xi32, #tpu.memory_space<smem>>) -> (i32, i32) {
    %c0_i32 = arith.constant 0 : i32
    %c0_i32_0 = arith.constant 0 : i32
    return %arg0, %c0_i32 : i32, i32
  }
  func.func @transform_1(%arg0: i32, %arg1: memref<32xi32, #tpu.memory_space<smem>>) -> (i32, i32) {
    %c0_i32 = arith.constant 0 : i32
    %c0_i32_0 = arith.constant 0 : i32
    return %arg0, %c0_i32 : i32, i32
  }
  func.func @transform_2(%arg0: i32, %arg1: memref<32xi32, #tpu.memory_space<smem>>) -> (i32, i32) {
    %c0_i32 = arith.constant 0 : i32
    %c0_i32_0 = arith.constant 0 : i32
    %c0_i32_1 = arith.constant 0 : i32
    return %c0_i32, %c0_i32_0 : i32, i32
  }
  func.func @transform_3(%arg0: i32, %arg1: memref<32xi32, #tpu.memory_space<smem>>) -> (i32, i32) {
    %c0_i32 = arith.constant 0 : i32
    %c0_i32_0 = arith.constant 0 : i32
    %c0_i32_1 = arith.constant 0 : i32
    return %c0_i32, %c0_i32_0 : i32, i32
  }
  func.func @transform_4(%arg0: i32, %arg1: memref<32xi32, #tpu.memory_space<smem>>) -> (i32, i32) {
    %c0_i32 = arith.constant 0 : i32
    %c0_i32_0 = arith.constant 0 : i32
    %c0_i32_1 = arith.constant 0 : i32
    return %c0_i32, %c0_i32_0 : i32, i32
  }
  func.func @transform_5(%arg0: i32, %arg1: memref<32xi32, #tpu.memory_space<smem>>) -> (i32, i32) {
    %c0_i32 = arith.constant 0 : i32
    %c0_i32_0 = arith.constant 0 : i32
    %c0_i32_1 = arith.constant 0 : i32
    return %c0_i32, %c0_i32_0 : i32, i32
  }
  func.func @transform_7(%arg0: i32, %arg1: memref<32xi32, #tpu.memory_space<smem>>) -> (i32, i32) {
    %c0_i32 = arith.constant 0 : i32
    %c0_i32_0 = arith.constant 0 : i32
    return %arg0, %c0_i32 : i32, i32
  }
}

</mosaic_0001>

<llo_original>
// kernel: tpu_custom_call.1
$region0: #{tpu_custom_call.1}
  #allocation0 [shape = 'u32[]', space=smem, size = 0x4, offset = 0x4, fixed_abs, tag = 'smem constant byte address 0x4 - core index']
  #allocation1 [shape = 'u32[72,128]{1,0:T(1,128)}', space=vmem, size = 0x9000, scoped, tag = 'internal scratch']
  #allocation2 [shape = 'f32[2,8,128]{2,1,0:T(8,128)}', space=vmem, size = 0x2000, scoped, tag = 'scratch operand']
  #allocation3 [shape = 's32[2]{0}', space=sflag, size = 0x8, scoped, tag = 'scratch operand']
  #allocation4 [shape = 's32[1]{0}', space=sflag, size = 0x4, scoped, tag = 'scoped memory for tpu_custom_call.1']
  #allocation5 [shape = 'u8[512]{0}', space=smem, size = 0x200, scoped, tag = 'prefetched SMEM operand 0']
  #allocation8 [shape = 's32[]', space=sflag, size = 0x4, offset = 0, fixed_abs, tag = 'sflag constant byte address 0x0 - dummy sync flag']
  #allocation9 [shape = 's32[]', space=sflag, size = 0x4, offset = 0, fixed_abs, tag = 'sflag constant byte address 0x0 - dummy sync flag']
  #allocation10 [shape = 'u32[]', space=smem, size = 0x4, offset = 0x44, fixed_abs, tag = 'smem constant byte address 0x44 - assertion arg 0']
  #allocation11 [shape = 'u32[]', space=smem, size = 0x4, offset = 0x48, fixed_abs, tag = 'smem constant byte address 0x48 - assertion arg 1']
  #allocation12 [shape = 's32[]', space=sflag, size = 0x4, offset = 0, fixed_abs, tag = 'sflag constant byte address 0x0 - dummy sync flag']
  #allocation13 [shape = 's32[]', space=sflag, size = 0x4, offset = 0, fixed_abs, tag = 'sflag constant byte address 0x0 - dummy sync flag']
  #allocation14 [shape = 's32[]', space=sflag, size = 0x4, offset = 0, fixed_abs, tag = 'sflag constant byte address 0x0 - dummy sync flag']
  #allocation15 [shape = 's32[]', space=sflag, size = 0x4, offset = 0, fixed_abs, tag = 'sflag constant byte address 0x0 - dummy sync flag']
  #allocation16 [shape = 's32[]', space=sflag, size = 0x4, offset = 0, fixed_abs, tag = 'sflag constant byte address 0x0 - dummy sync flag']
  #allocation17 [shape = 's32[]', space=sflag, size = 0x4, offset = 0, fixed_abs, tag = 'sflag constant byte address 0x0 - dummy sync flag']
  #allocation18 [shape = 's32[]', space=sflag, size = 0x4, offset = 0, fixed_abs, tag = 'sflag constant byte address 0x0 - dummy sync flag']
  #allocation19 [shape = 's32[]', space=sflag, size = 0x4, offset = 0, fixed_abs, tag = 'sflag constant byte address 0x0 - dummy sync flag']
  #allocation20 [shape = 's32[]', space=sflag, size = 0x4, offset = 0, fixed_abs, tag = 'sflag constant byte address 0x0 - dummy sync flag']
  #allocation21 [shape = 's32[]', space=sflag, size = 0x4, offset = 0, fixed_abs, tag = 'sflag constant byte address 0x0 - dummy sync flag']
  #allocation22 [shape = 's32[]', space=sflag, size = 0x4, offset = 0, fixed_abs, tag = 'sflag constant byte address 0x0 - dummy sync flag']
  #allocation23 [shape = 's32[]', space=sflag, size = 0x4, offset = 0, fixed_abs, tag = 'sflag constant byte address 0x0 - dummy sync flag']
  #allocation24 [shape = 's32[]', space=sflag, size = 0x4, offset = 0, fixed_abs, tag = 'sflag constant byte address 0x0 - dummy sync flag']
  #allocation25 [shape = 's32[]', space=sflag, size = 0x4, offset = 0, fixed_abs, tag = 'sflag constant byte address 0x0 - dummy sync flag']
  #allocation26 [shape = 's32[]', space=sflag, size = 0x4, offset = 0, fixed_abs, tag = 'sflag constant byte address 0x0 - dummy sync flag']
  #allocation27 [shape = 's32[]', space=sflag, size = 0x4, offset = 0, fixed_abs, tag = 'sflag constant byte address 0x0 - dummy sync flag']
  #allocation28 [shape = 's32[]', space=sflag, size = 0x4, offset = 0, fixed_abs, tag = 'sflag constant byte address 0x0 - dummy sync flag']
  #allocation29 [shape = 's32[]', space=sflag, size = 0x4, offset = 0, fixed_abs, tag = 'sflag constant byte address 0x0 - dummy sync flag']
  #allocation30 [shape = 's32[]', space=sflag, size = 0x4, offset = 0, fixed_abs, tag = 'sflag constant byte address 0x0 - dummy sync flag']
  #allocation31 [shape = 's32[]', space=sflag, size = 0x4, offset = 0, fixed_abs, tag = 'sflag constant byte address 0x0 - dummy sync flag']
  #allocation32 [shape = 's32[]', space=sflag, size = 0x4, offset = 0, fixed_abs, tag = 'sflag constant byte address 0x0 - dummy sync flag']
  #allocation33 [shape = 's32[]', space=sflag, size = 0x4, offset = 0, fixed_abs, tag = 'sflag constant byte address 0x0 - dummy sync flag']
  #allocation34 [shape = 's32[]', space=sflag, size = 0x4, offset = 0, fixed_abs, tag = 'sflag constant byte address 0x0 - dummy sync flag']
  #allocation35 [shape = 's32[]', space=sflag, size = 0x4, offset = 0, fixed_abs, tag = 'sflag constant byte address 0x0 - dummy sync flag']
  #allocation36 [shape = 's32[]', space=sflag, size = 0x4, offset = 0, fixed_abs, tag = 'sflag constant byte address 0x0 - dummy sync flag']
  #allocation37 [shape = 's32[]', space=sflag, size = 0x4, offset = 0, fixed_abs, tag = 'sflag constant byte address 0x0 - dummy sync flag']
  #allocation38 [shape = 's32[]', space=sflag, size = 0x4, offset = 0, fixed_abs, tag = 'sflag constant byte address 0x0 - dummy sync flag']
  #allocation39 [shape = 's32[]', space=sflag, size = 0x4, offset = 0, fixed_abs, tag = 'sflag constant byte address 0x0 - dummy sync flag']
  #allocation40 [shape = 's32[]', space=sflag, size = 0x4, offset = 0, fixed_abs, tag = 'sflag constant byte address 0x0 - dummy sync flag']
  #allocation41 [shape = 's32[]', space=sflag, size = 0x4, offset = 0, fixed_abs, tag = 'sflag constant byte address 0x0 - dummy sync flag']
  %s0 = inlined_call_operand.vmem [shape: s32[32], index: 0, kind: input, shape index: {}]
  %s1 = inlined_call_operand.vmem [shape: s32[32,1], index: 1, kind: input, shape index: {}]
  %s2 = inlined_call_operand.vmem [shape: s32[32,1], index: 2, kind: input, shape index: {}]
  %s3 = inlined_call_operand.vmem [shape: f32[64,128], index: 3, kind: input, shape index: {}]
  %s4 = inlined_call_operand.vmem [shape: f32[2,128], index: 4, kind: input, shape index: {}]
  %s5 = inlined_call_operand.vmem [shape: f32[1,128], index: 5, kind: input, shape index: {}]
  %s6 = inlined_call_operand.vmem [shape: f32[1,128], index: 6, kind: input, shape index: {}]
  %s7 = inlined_call_operand.hbm [shape: f32[128,128], index: 7, kind: input, shape index: {}]
  %s8 = inlined_call_operand.hbm [shape: f32[32,128], index: 8, kind: output, shape index: {}]
  %s9 = sld [smem:[#allocation0]]
  $region129: #{tpu_custom_call.1} parent=0
    _
  %s11 = ssub.s32 1, %s9
  %s12 = scalar_select 0, %s11, %s9
  %s14 = sshll.u32 %s0, 4
  %s15 = int_to_ptr.vmem [resolvable:$true] %s14
  %17 = dma.vmem_to_smem %s15, 16, [#allocation5], [#allocation4]
  %19 = dma.done [#allocation4], 16
  %20 = sfence
  $region1: #{tpu_custom_call.1} parent=0
    #allocation6 [shape = 'u8[8192]{0}', space=vmem, size = 0x2000, scoped, tag = 'output window, operand 0']
    #allocation7 [shape = 's32[2]{0}', space=sflag, size = 0x8, scoped, tag = 'scoped memory for tpu_custom_call.1']
    %21 = vsyncpa [#allocation7], 0
    %s22 = scalar_lea.sflag [#allocation7], 1
    %23 = vsyncpa %s22, 0
    loop: start=0, step=1, limit=6
    $region2: #{tpu_custom_call.1} parent=1 // loop_pre_header
      _
    $region3: #{tpu_custom_call.1} parent=1 // loop_header
      %s25 = sphi 0, %s29
      %p26 = scmp.ge.s32.totalorder %s25, 6
      %s35 = sphi 0, %s37
      %s38 = sphi 0, %s35
      %s39 = sphi 0, %s38
      %s55 = sphi 0, %s39
      %s61 = sphi 0, %s63
      %s64 = sphi 0, %s61
      %s65 = sphi 0, %s64
      %s81 = sphi 0, %s65
      %s85 = sphi 0, %s85
      %s87 = sphi 0, %s85
      %s88 = sphi 0, %s87
      %s102 = sphi 0, %s88
      %s106 = sphi 0, %s106
      %s108 = sphi 0, %s106
      %s109 = sphi 0, %s108
      %s123 = sphi 0, %s109
      %s127 = sphi 0, %s127
      %s129 = sphi 0, %s127
      %s130 = sphi 0, %s129
      %s144 = sphi 0, %s130
      %s148 = sphi 0, %s148
      %s150 = sphi 0, %s148
      %s151 = sphi 0, %s150
      %s165 = sphi 0, %s151
      %s171 = sphi 0, %s173
      %s174 = sphi 0, %s171
      %s175 = sphi 0, %s174
      %s191 = sphi 0, %s175
    $region4: #{tpu_custom_call.1} parent=1 // loop_header_branch
      %28 = sbr.rel (%p26) target = $region8
    $region5: #{tpu_custom_call.1} parent=1 // loop_body
      %s30 = ssub.s32 %s25, 1
      %s31 = ssub.s32 %s25, 2
      %s32 = sadd.s32 %s25, 1
      %s33 = ssub.s32 %s25, %s32
      %p34 = scmp.eq.s32.totalorder %s33, 0
      %s36 = sadd.s32 %s35, 1
      %s37 = scalar_select %p34, %s35, %s36
      %p40 = pneg %p34
      %p41 = scmp.eq.s32.totalorder %s25, 3
      %p42 = por %p40, %p41
      %p43 = scmp.ne.s32.totalorder %s35, %s38
      %p44 = scmp.eq.s32.totalorder %s25, 0
      %p45 = por %p43, %p44
      %p46 = scmp.ne.s32.totalorder %s35, %s38
      %p47 = scmp.eq.s32.totalorder %s30, 3
      %p48 = por %p46, %p47
      %p49 = scmp.ne.s32.totalorder %s38, %s39
      %p50 = scmp.eq.s32.totalorder %s30, 0
      %p51 = por %p49, %p50
      %p52 = scmp.ne.s32.totalorder %s38, %s39
      %p53 = scmp.eq.s32.totalorder %s31, 3
      %p54 = por %p52, %p53
      %p56 = scmp.ne.s32.totalorder %s39, %s55
      %p57 = scmp.eq.s32.totalorder %s31, 0
      %p58 = por %p56, %p57
      %s59 = ssub.s32 %s25, %s32
      %p60 = scmp.eq.s32.totalorder %s59, 0
      %s62 = sadd.s32 %s61, 1
      %s63 = scalar_select %p60, %s61, %s62
      %p66 = pneg %p60
      %p67 = scmp.eq.s32.totalorder %s25, 3
      %p68 = por %p66, %p67
      %p69 = scmp.ne.s32.totalorder %s61, %s64
      %p70 = scmp.eq.s32.totalorder %s25, 0
      %p71 = por %p69, %p70
      %p72 = scmp.ne.s32.totalorder %s61, %s64
      %p73 = scmp.eq.s32.totalorder %s30, 3
      %p74 = por %p72, %p73
      %p75 = scmp.ne.s32.totalorder %s64, %s65
      %p76 = scmp.eq.s32.totalorder %s30, 0
      %p77 = por %p75, %p76
      %p78 = scmp.ne.s32.totalorder %s64, %s65
      %p79 = scmp.eq.s32.totalorder %s31, 3
      %p80 = por %p78, %p79
      %p82 = scmp.ne.s32.totalorder %s65, %s81
      %p83 = scmp.eq.s32.totalorder %s31, 0
      %p84 = por %p82, %p83
      %s86 = sadd.s32 %s85, 1
      %p89 = scmp.eq.s32.totalorder %s25, 3
      %p90 = scmp.ne.s32.totalorder %s85, %s87
      %p91 = scmp.eq.s32.totalorder %s25, 0
      %p92 = por %p90, %p91
      %p93 = scmp.ne.s32.totalorder %s85, %s87
      %p94 = scmp.eq.s32.totalorder %s30, 3
      %p95 = por %p93, %p94
      %p96 = scmp.ne.s32.totalorder %s87, %s88
      %p97 = scmp.eq.s32.totalorder %s30, 0
      %p98 = por %p96, %p97
      %p99 = scmp.ne.s32.totalorder %s87, %s88
      %p100 = scmp.eq.s32.totalorder %s31, 3
      %p101 = por %p99, %p100
      %p103 = scmp.ne.s32.totalorder %s88, %s102
      %p104 = scmp.eq.s32.totalorder %s31, 0
      %p105 = por %p103, %p104
      %s107 = sadd.s32 %s106, 1
      %p110 = scmp.eq.s32.totalorder %s25, 3
      %p111 = scmp.ne.s32.totalorder %s106, %s108
      %p112 = scmp.eq.s32.totalorder %s25, 0
      %p113 = por %p111, %p112
      %p114 = scmp.ne.s32.totalorder %s106, %s108
      %p115 = scmp.eq.s32.totalorder %s30, 3
      %p116 = por %p114, %p115
      %p117 = scmp.ne.s32.totalorder %s108, %s109
      %p118 = scmp.eq.s32.totalorder %s30, 0
      %p119 = por %p117, %p118
      %p120 = scmp.ne.s32.totalorder %s108, %s109
      %p121 = scmp.eq.s32.totalorder %s31, 3
      %p122 = por %p120, %p121
      %p124 = scmp.ne.s32.totalorder %s109, %s123
      %p125 = scmp.eq.s32.totalorder %s31, 0
      %p126 = por %p124, %p125
      %s128 = sadd.s32 %s127, 1
      %p131 = scmp.eq.s32.totalorder %s25, 3
      %p132 = scmp.ne.s32.totalorder %s127, %s129
      %p133 = scmp.eq.s32.totalorder %s25, 0
      %p134 = por %p132, %p133
      %p135 = scmp.ne.s32.totalorder %s127, %s129
      %p136 = scmp.eq.s32.totalorder %s30, 3
      %p137 = por %p135, %p136
      %p138 = scmp.ne.s32.totalorder %s129, %s130
      %p139 = scmp.eq.s32.totalorder %s30, 0
      %p140 = por %p138, %p139
      %p141 = scmp.ne.s32.totalorder %s129, %s130
      %p142 = scmp.eq.s32.totalorder %s31, 3
      %p143 = por %p141, %p142
      %p145 = scmp.ne.s32.totalorder %s130, %s144
      %p146 = scmp.eq.s32.totalorder %s31, 0
      %p147 = por %p145, %p146
      %s149 = sadd.s32 %s148, 1
      %p152 = scmp.eq.s32.totalorder %s25, 3
      %p153 = scmp.ne.s32.totalorder %s148, %s150
      %p154 = scmp.eq.s32.totalorder %s25, 0
      %p155 = por %p153, %p154
      %p156 = scmp.ne.s32.totalorder %s148, %s150
      %p157 = scmp.eq.s32.totalorder %s30, 3
      %p158 = por %p156, %p157
      %p159 = scmp.ne.s32.totalorder %s150, %s151
      %p160 = scmp.eq.s32.totalorder %s30, 0
      %p161 = por %p159, %p160
      %p162 = scmp.ne.s32.totalorder %s150, %s151
      %p163 = scmp.eq.s32.totalorder %s31, 3
      %p164 = por %p162, %p163
      %p166 = scmp.ne.s32.totalorder %s151, %s165
      %p167 = scmp.eq.s32.totalorder %s31, 0
      %p168 = por %p166, %p167
      %s169 = ssub.s32 %s25, %s32
      %p170 = scmp.eq.s32.totalorder %s169, 0
      %s172 = sadd.s32 %s171, 1
      %s173 = scalar_select %p170, %s171, %s172
      %p176 = pneg %p170
      %p177 = scmp.eq.s32.totalorder %s25, 3
      %p178 = por %p176, %p177
      %p179 = scmp.ne.s32.totalorder %s171, %s174
      %p180 = scmp.eq.s32.totalorder %s25, 0
      %p181 = por %p179, %p180
      %p182 = scmp.ne.s32.totalorder %s171, %s174
      %p183 = scmp.eq.s32.totalorder %s30, 3
      %p184 = por %p182, %p183
      %p185 = scmp.ne.s32.totalorder %s174, %s175
      %p186 = scmp.eq.s32.totalorder %s30, 0
      %p187 = por %p185, %p186
      %p188 = scmp.ne.s32.totalorder %s174, %s175
      %p189 = scmp.eq.s32.totalorder %s31, 3
      %p190 = por %p188, %p189
      %p192 = scmp.ne.s32.totalorder %s175, %s191
      %p193 = scmp.eq.s32.totalorder %s31, 0
      %p194 = por %p192, %p193
      %p195 = scmp.le.s32.totalorder 1, %s25
      %p196 = scmp.lt.s32.totalorder %s25, 5
      %p197 = pnand %p195, %p196
      %p198 = pneg %p197
      // Predicated region
      $region9: #{tpu_custom_call.1} parent=5 // pred_check
        _
      $region10: #{tpu_custom_call.1} parent=5 // pred_check_branch
        %200 = sbr.rel (%p197) target = $region12
      $region11: #{tpu_custom_call.1} parent=5 // pred_region
        %s201 = ssub.s32 %s25, 1
        // Predicated region
        $region13: #{tpu_custom_call.1} parent=11 // pred_check
          %p202 = pneg %p98
        $region14: #{tpu_custom_call.1} parent=11 // pred_check_branch
          %204 = sbr.rel (%p202) target = $region16
        $region15: #{tpu_custom_call.1} parent=11 // pred_region
          _
        $region16: #{tpu_custom_call.1} parent=11 // pred_fallthru
          _
        // Predicated region
        $region17: #{tpu_custom_call.1} parent=11 // pred_check
          %p205 = pneg %p119
        $region18: #{tpu_custom_call.1} parent=11 // pred_check_branch
          %207 = sbr.rel (%p205) target = $region20
        $region19: #{tpu_custom_call.1} parent=11 // pred_region
          _
        $region20: #{tpu_custom_call.1} parent=11 // pred_fallthru
          _
        // Predicated region
        $region21: #{tpu_custom_call.1} parent=11 // pred_check
          %p208 = pneg %p140
        $region22: #{tpu_custom_call.1} parent=11 // pred_check_branch
          %210 = sbr.rel (%p208) target = $region24
        $region23: #{tpu_custom_call.1} parent=11 // pred_region
          _
        $region24: #{tpu_custom_call.1} parent=11 // pred_fallthru
          _
        // Predicated region
        $region25: #{tpu_custom_call.1} parent=11 // pred_check
          %p211 = pneg %p161
        $region26: #{tpu_custom_call.1} parent=11 // pred_check_branch
          %213 = sbr.rel (%p211) target = $region28
        $region27: #{tpu_custom_call.1} parent=11 // pred_region
          _
        $region28: #{tpu_custom_call.1} parent=11 // pred_fallthru
          _
      $region12: #{tpu_custom_call.1} parent=5 // pred_fallthru
        _
      %p214 = scmp.lt.s32.totalorder %s25, 4
      // Predicated region
      $region29: #{tpu_custom_call.1} parent=5 // pred_check
        %p215 = pneg %p214
      $region30: #{tpu_custom_call.1} parent=5 // pred_check_branch
        %217 = sbr.rel (%p215) target = $region32
      $region31: #{tpu_custom_call.1} parent=5 // pred_region
        // Predicated region
        $region33: #{tpu_custom_call.1} parent=31 // pred_check
          %p218 = pneg %p45
        $region34: #{tpu_custom_call.1} parent=31 // pred_check_branch
          %220 = sbr.rel (%p218) target = $region36
        $region35: #{tpu_custom_call.1} parent=31 // pred_region
          %p221 = scmp.lt.s32.totalorder %s25, 3
          %s222 = scalar_select %p221, %s25, 3
          %s223 = smul.addr %s222, 8
          %s224 = scalar_lea.vmem %s1, %s223
        $region36: #{tpu_custom_call.1} parent=31 // pred_fallthru
          _
        // Predicated region
        $region37: #{tpu_custom_call.1} parent=31 // pred_check
          %p225 = pneg %p71
        $region38: #{tpu_custom_call.1} parent=31 // pred_check_branch
          %227 = sbr.rel (%p225) target = $region40
        $region39: #{tpu_custom_call.1} parent=31 // pred_region
          %p228 = scmp.lt.s32.totalorder %s25, 3
          %s229 = scalar_select %p228, %s25, 3
          %s230 = smul.addr %s229, 8
          %s231 = scalar_lea.vmem %s2, %s230
        $region40: #{tpu_custom_call.1} parent=31 // pred_fallthru
          _
      $region32: #{tpu_custom_call.1} parent=5 // pred_fallthru
        _
      %p232 = scmp.le.s32.totalorder 1, %s25
      %p233 = scmp.lt.s32.totalorder %s25, 5
      %p234 = pnand %p232, %p233
      %p235 = pneg %p234
      // Predicated region
      $region41: #{tpu_custom_call.1} parent=5 // pred_check
        _
      $region42: #{tpu_custom_call.1} parent=5 // pred_check_branch
        %237 = sbr.rel (%p234) target = $region44
      $region43: #{tpu_custom_call.1} parent=5 // pred_region
        %s238 = ssub.s32 %s25, 1
        %p239 = scmp.lt.s32.totalorder %s30, 3
        %s240 = scalar_select %p239, %s30, 3
        %s241 = smul.addr %s240, 8
        %s242 = scalar_lea.vmem %s1, %s241
        %p243 = pneg %p51
        %p244 = pneg %p48
        %p245 = scmp.lt.s32.totalorder %s30, 3
        %s246 = scalar_select %p245, %s30, 3
        %s247 = smul.addr %s246, 8
        %s248 = scalar_lea.vmem %s2, %s247
        %p249 = pneg %p77
        %p250 = pneg %p74
        %p251 = pneg %p98
        %p252 = pneg %p95
        %p253 = pneg %p119
        %p254 = pneg %p116
        %p255 = pneg %p140
        %p256 = pneg %p137
        %p257 = pneg %p161
        %p258 = pneg %p158
        %p259 = pneg %p187
        %p260 = pneg %p184
        %s261 = sand.u32 %s174, 1
        %s262 = scalar_lea.sflag [#allocation7], %s261
        %s263 = sand.u32 %s174, 1
        %s264 = smul.addr %s263, 8
        %s265 = scalar_lea.vmem [#allocation6], %s264
        %p266 = scmp.lt.s32.totalorder %s30, 3
        %s267 = scalar_select %p266, %s30, 3
        %s268 = smul.addr %s267, 8
        %s269 = scalar_lea.vmem %s1, %s268
        %p270 = scmp.lt.s32.totalorder %s30, 3
        %s271 = scalar_select %p270, %s30, 3
        %s272 = smul.addr %s271, 8
        %s273 = scalar_lea.vmem %s2, %s272
        %p274 = scmp.lt.s32.totalorder %s30, 0
        %s275 = ssub.s32 0, %s30
        %s276 = scalar_select %p274, %s275, %s30
        %s277 = sand.u32 %s276, 1
        %s278 = ssub.s32 0, %s277
        %s279 = scalar_select %p274, %s278, %s277
        %p280 = scmp.eq.s32.totalorder %s30, 0
        // Predicated region
        $region45: #{tpu_custom_call.1} parent=43 // pred_check
          %p281 = pneg %p280
        $region46: #{tpu_custom_call.1} parent=43 // pred_check_branch
          %283 = sbr.rel (%p281) target = $region48
        $region47: #{tpu_custom_call.1} parent=43 // pred_region
          %s284 = sld [smem:[#allocation5]]
          %s285 = scalar_lea.hbm %s7, %s284
          // Predicated region
          $region49: #{tpu_custom_call.1} parent=47 // pred_check
            _
          $region50: #{tpu_custom_call.1} parent=47 // pred_check_branch
            %287 = sbr.rel target = $region52
          $region51: #{tpu_custom_call.1} parent=47 // pred_region
            %288 = sst [smem:[#allocation10]] [#allocation9]
            %289 = sst [smem:[#allocation11]] [#allocation8]
          $region52: #{tpu_custom_call.1} parent=47 // pred_fallthru
            _
          %291 = shalt.err (0)
          %s293 = sshll.u32 %s285, 4
          %s294 = int_to_ptr.hbm [resolvable:$true] %s293
          %s295 = sshll.u32 [#allocation2], 4
          %s296 = int_to_ptr.vmem [resolvable:$true] %s295
          %298 = dma.hbm_to_vmem [thread:$0]  %s294, 16, %s296, [#allocation3]
          %s299 = sld [smem:[#allocation5 + $0x1]]
          %s300 = scalar_lea.hbm %s7, %s299
          %s301 = scalar_lea.vmem [#allocation2], 1
          // Predicated region
          $region53: #{tpu_custom_call.1} parent=47 // pred_check
            _
          $region54: #{tpu_custom_call.1} parent=47 // pred_check_branch
            %303 = sbr.rel target = $region56
          $region55: #{tpu_custom_call.1} parent=47 // pred_region
            %304 = sst [smem:[#allocation10]] [#allocation13]
            %305 = sst [smem:[#allocation11]] [#allocation12]
          $region56: #{tpu_custom_call.1} parent=47 // pred_fallthru
            _
          %307 = shalt.err (0)
          %s309 = sshll.u32 %s300, 4
          %s310 = int_to_ptr.hbm [resolvable:$true] %s309
          %s311 = sshll.u32 %s301, 4
          %s312 = int_to_ptr.vmem [resolvable:$true] %s311
          %314 = dma.hbm_to_vmem [thread:$0]  %s310, 16, %s312, [#allocation3]
          %s315 = sld [smem:[#allocation5 + $0x2]]
          %s316 = scalar_lea.hbm %s7, %s315
          %s317 = scalar_lea.vmem [#allocation2], 2
          // Predicated region
          $region57: #{tpu_custom_call.1} parent=47 // pred_check
            _
          $region58: #{tpu_custom_call.1} parent=47 // pred_check_branch
            %319 = sbr.rel target = $region60
          $region59: #{tpu_custom_call.1} parent=47 // pred_region
            %320 = sst [smem:[#allocation10]] [#allocation15]
            %321 = sst [smem:[#allocation11]] [#allocation14]
          $region60: #{tpu_custom_call.1} parent=47 // pred_fallthru
            _
          %323 = shalt.err (0)
          %s325 = sshll.u32 %s316, 4
          %s326 = int_to_ptr.hbm [resolvable:$true] %s325
          %s327 = sshll.u32 %s317, 4
          %s328 = int_to_ptr.vmem [resolvable:$true] %s327
          %330 = dma.hbm_to_vmem [thread:$0]  %s326, 16, %s328, [#allocation3]
          %s331 = sld [smem:[#allocation5 + $0x3]]
          %s332 = scalar_lea.hbm %s7, %s331
          %s333 = scalar_lea.vmem [#allocation2], 3
          // Predicated region
          $region61: #{tpu_custom_call.1} parent=47 // pred_check
            _
          $region62: #{tpu_custom_call.1} parent=47 // pred_check_branch
            %335 = sbr.rel target = $region64
          $region63: #{tpu_custom_call.1} parent=47 // pred_region
            %336 = sst [smem:[#allocation10]] [#allocation17]
            %337 = sst [smem:[#allocation11]] [#allocation16]
          $region64: #{tpu_custom_call.1} parent=47 // pred_fallthru
            _
          %339 = shalt.err (0)
          %s341 = sshll.u32 %s332, 4
          %s342 = int_to_ptr.hbm [resolvable:$true] %s341
          %s343 = sshll.u32 %s333, 4
          %s344 = int_to_ptr.vmem [resolvable:$true] %s343
          %346 = dma.hbm_to_vmem [thread:$0]  %s342, 16, %s344, [#allocation3]
          %s347 = sld [smem:[#allocation5 + $0x4]]
          %s348 = scalar_lea.hbm %s7, %s347
          %s349 = scalar_lea.vmem [#allocation2], 4
          // Predicated region
          $region65: #{tpu_custom_call.1} parent=47 // pred_check
            _
          $region66: #{tpu_custom_call.1} parent=47 // pred_check_branch
            %351 = sbr.rel target = $region68
          $region67: #{tpu_custom_call.1} parent=47 // pred_region
            %352 = sst [smem:[#allocation10]] [#allocation19]
            %353 = sst [smem:[#allocation11]] [#allocation18]
          $region68: #{tpu_custom_call.1} parent=47 // pred_fallthru
            _
          %355 = shalt.err (0)
          %s357 = sshll.u32 %s348, 4
          %s358 = int_to_ptr.hbm [resolvable:$true] %s357
          %s359 = sshll.u32 %s349, 4
          %s360 = int_to_ptr.vmem [resolvable:$true] %s359
          %362 = dma.hbm_to_vmem [thread:$0]  %s358, 16, %s360, [#allocation3]
          %s363 = sld [smem:[#allocation5 + $0x5]]
          %s364 = scalar_lea.hbm %s7, %s363
          %s365 = scalar_lea.vmem [#allocation2], 5
          // Predicated region
          $region69: #{tpu_custom_call.1} parent=47 // pred_check
            _
          $region70: #{tpu_custom_call.1} parent=47 // pred_check_branch
            %367 = sbr.rel target = $region72
          $region71: #{tpu_custom_call.1} parent=47 // pred_region
            %368 = sst [smem:[#allocation10]] [#allocation21]
            %369 = sst [smem:[#allocation11]] [#allocation20]
          $region72: #{tpu_custom_call.1} parent=47 // pred_fallthru
            _
          %371 = shalt.err (0)
          %s373 = sshll.u32 %s364, 4
          %s374 = int_to_ptr.hbm [resolvable:$true] %s373
          %s375 = sshll.u32 %s365, 4
          %s376 = int_to_ptr.vmem [resolvable:$true] %s375
          %378 = dma.hbm_to_vmem [thread:$0]  %s374, 16, %s376, [#allocation3]
          %s379 = sld [smem:[#allocation5 + $0x6]]
          %s380 = scalar_lea.hbm %s7, %s379
          %s381 = scalar_lea.vmem [#allocation2], 6
          // Predicated region
          $region73: #{tpu_custom_call.1} parent=47 // pred_check
            _
          $region74: #{tpu_custom_call.1} parent=47 // pred_check_branch
            %383 = sbr.rel target = $region76
          $region75: #{tpu_custom_call.1} parent=47 // pred_region
            %384 = sst [smem:[#allocation10]] [#allocation23]
            %385 = sst [smem:[#allocation11]] [#allocation22]
          $region76: #{tpu_custom_call.1} parent=47 // pred_fallthru
            _
          %387 = shalt.err (0)
          %s389 = sshll.u32 %s380, 4
          %s390 = int_to_ptr.hbm [resolvable:$true] %s389
          %s391 = sshll.u32 %s381, 4
          %s392 = int_to_ptr.vmem [resolvable:$true] %s391
          %394 = dma.hbm_to_vmem [thread:$0]  %s390, 16, %s392, [#allocation3]
          %s395 = sld [smem:[#allocation5 + $0x7]]
          %s396 = scalar_lea.hbm %s7, %s395
          %s397 = scalar_lea.vmem [#allocation2], 7
          // Predicated region
          $region77: #{tpu_custom_call.1} parent=47 // pred_check
            _
          $region78: #{tpu_custom_call.1} parent=47 // pred_check_branch
            %399 = sbr.rel target = $region80
          $region79: #{tpu_custom_call.1} parent=47 // pred_region
            %400 = sst [smem:[#allocation10]] [#allocation25]
            %401 = sst [smem:[#allocation11]] [#allocation24]
          $region80: #{tpu_custom_call.1} parent=47 // pred_fallthru
            _
          %403 = shalt.err (0)
          %s405 = sshll.u32 %s396, 4
          %s406 = int_to_ptr.hbm [resolvable:$true] %s405
          %s407 = sshll.u32 %s397, 4
          %s408 = int_to_ptr.vmem [resolvable:$true] %s407
          %410 = dma.hbm_to_vmem [thread:$0]  %s406, 16, %s408, [#allocation3]
        $region48: #{tpu_custom_call.1} parent=43 // pred_fallthru
          _
        %s411 = sadd.s32 %s30, 1
        %p412 = scmp.lt.s32.totalorder %s411, 4
        // Predicated region
        $region81: #{tpu_custom_call.1} parent=43 // pred_check
          %p413 = pneg %p412
        $region82: #{tpu_custom_call.1} parent=43 // pred_check_branch
          %415 = sbr.rel (%p413) target = $region84
        $region83: #{tpu_custom_call.1} parent=43 // pred_region
          %p416 = scmp.lt.s32.totalorder %s411, 0
          %s417 = ssub.s32 0, %s411
          %s418 = scalar_select %p416, %s417, %s411
          %s419 = sand.u32 %s418, 1
          %s420 = ssub.s32 0, %s419
          %s421 = scalar_select %p416, %s420, %s419
          %s422 = smul.u32 %s411, 8
          %s423 = sld [smem:[#allocation5 + %s422]]
          %s424 = scalar_lea.hbm %s7, %s423
          %s425 = smul.u32 %s421, 8
          %s426 = scalar_lea.vmem [#allocation2], %s425
          %s427 = scalar_lea.sflag [#allocation3], %s421
          // Predicated region
          $region85: #{tpu_custom_call.1} parent=83 // pred_check
            _
          $region86: #{tpu_custom_call.1} parent=83 // pred_check_branch
            %429 = sbr.rel target = $region88
          $region87: #{tpu_custom_call.1} parent=83 // pred_region
            %430 = sst [smem:[#allocation10]] [#allocation27]
            %431 = sst [smem:[#allocation11]] [#allocation26]
          $region88: #{tpu_custom_call.1} parent=83 // pred_fallthru
            _
          %433 = shalt.err (0)
          %s435 = sshll.u32 %s424, 4
          %s436 = int_to_ptr.hbm [resolvable:$true] %s435
          %s437 = sshll.u32 %s426, 4
          %s438 = int_to_ptr.vmem [resolvable:$true] %s437
          %440 = dma.hbm_to_vmem [thread:$0]  %s436, 16, %s438, %s427
          %s441 = sadd.s32 %s422, 1
          %s442 = sld [smem:[#allocation5 + %s441]]
          %s443 = scalar_lea.hbm %s7, %s442
          %s444 = sadd.s32 1, %s425
          %s445 = scalar_lea.vmem [#allocation2], %s444
          // Predicated region
          $region89: #{tpu_custom_call.1} parent=83 // pred_check
            _
          $region90: #{tpu_custom_call.1} parent=83 // pred_check_branch
            %447 = sbr.rel target = $region92
          $region91: #{tpu_custom_call.1} parent=83 // pred_region
            %448 = sst [smem:[#allocation10]] [#allocation29]
            %449 = sst [smem:[#allocation11]] [#allocation28]
          $region92: #{tpu_custom_call.1} parent=83 // pred_fallthru
            _
          %451 = shalt.err (0)
          %s453 = sshll.u32 %s443, 4
          %s454 = int_to_ptr.hbm [resolvable:$true] %s453
          %s455 = sshll.u32 %s445, 4
          %s456 = int_to_ptr.vmem [resolvable:$true] %s455
          %458 = dma.hbm_to_vmem [thread:$0]  %s454, 16, %s456, %s427
          %s459 = sadd.s32 %s422, 2
          %s460 = sld [smem:[#allocation5 + %s459]]
          %s461 = scalar_lea.hbm %s7, %s460
          %s462 = sadd.s32 2, %s425
          %s463 = scalar_lea.vmem [#allocation2], %s462
          // Predicated region
          $region93: #{tpu_custom_call.1} parent=83 // pred_check
            _
          $region94: #{tpu_custom_call.1} parent=83 // pred_check_branch
            %465 = sbr.rel target = $region96
          $region95: #{tpu_custom_call.1} parent=83 // pred_region
            %466 = sst [smem:[#allocation10]] [#allocation31]
            %467 = sst [smem:[#allocation11]] [#allocation30]
          $region96: #{tpu_custom_call.1} parent=83 // pred_fallthru
            _
          %469 = shalt.err (0)
          %s471 = sshll.u32 %s461, 4
          %s472 = int_to_ptr.hbm [resolvable:$true] %s471
          %s473 = sshll.u32 %s463, 4
          %s474 = int_to_ptr.vmem [resolvable:$true] %s473
          %476 = dma.hbm_to_vmem [thread:$0]  %s472, 16, %s474, %s427
          %s477 = sadd.s32 %s422, 3
          %s478 = sld [smem:[#allocation5 + %s477]]
          %s479 = scalar_lea.hbm %s7, %s478
          %s480 = sadd.s32 3, %s425
          %s481 = scalar_lea.vmem [#allocation2], %s480
          // Predicated region
          $region97: #{tpu_custom_call.1} parent=83 // pred_check
            _
          $region98: #{tpu_custom_call.1} parent=83 // pred_check_branch
            %483 = sbr.rel target = $region100
          $region99: #{tpu_custom_call.1} parent=83 // pred_region
            %484 = sst [smem:[#allocation10]] [#allocation33]
            %485 = sst [smem:[#allocation11]] [#allocation32]
          $region100: #{tpu_custom_call.1} parent=83 // pred_fallthru
            _
          %487 = shalt.err (0)
          %s489 = sshll.u32 %s479, 4
          %s490 = int_to_ptr.hbm [resolvable:$true] %s489
          %s491 = sshll.u32 %s481, 4
          %s492 = int_to_ptr.vmem [resolvable:$true] %s491
          %494 = dma.hbm_to_vmem [thread:$0]  %s490, 16, %s492, %s427
          %s495 = sadd.s32 %s422, 4
          %s496 = sld [smem:[#allocation5 + %s495]]
          %s497 = scalar_lea.hbm %s7, %s496
          %s498 = sadd.s32 4, %s425
          %s499 = scalar_lea.vmem [#allocation2], %s498
          // Predicated region
          $region101: #{tpu_custom_call.1} parent=83 // pred_check
            _
          $region102: #{tpu_custom_call.1} parent=83 // pred_check_branch
            %501 = sbr.rel target = $region104
          $region103: #{tpu_custom_call.1} parent=83 // pred_region
            %502 = sst [smem:[#allocation10]] [#allocation35]
            %503 = sst [smem:[#allocation11]] [#allocation34]
          $region104: #{tpu_custom_call.1} parent=83 // pred_fallthru
            _
          %505 = shalt.err (0)
          %s507 = sshll.u32 %s497, 4
          %s508 = int_to_ptr.hbm [resolvable:$true] %s507
          %s509 = sshll.u32 %s499, 4
          %s510 = int_to_ptr.vmem [resolvable:$true] %s509
          %512 = dma.hbm_to_vmem [thread:$0]  %s508, 16, %s510, %s427
          %s513 = sadd.s32 %s422, 5
          %s514 = sld [smem:[#allocation5 + %s513]]
          %s515 = scalar_lea.hbm %s7, %s514
          %s516 = sadd.s32 5, %s425
          %s517 = scalar_lea.vmem [#allocation2], %s516
          // Predicated region
          $region105: #{tpu_custom_call.1} parent=83 // pred_check
            _
          $region106: #{tpu_custom_call.1} parent=83 // pred_check_branch
            %519 = sbr.rel target = $region108
          $region107: #{tpu_custom_call.1} parent=83 // pred_region
            %520 = sst [smem:[#allocation10]] [#allocation37]
            %521 = sst [smem:[#allocation11]] [#allocation36]
          $region108: #{tpu_custom_call.1} parent=83 // pred_fallthru
            _
          %523 = shalt.err (0)
          %s525 = sshll.u32 %s515, 4
          %s526 = int_to_ptr.hbm [resolvable:$true] %s525
          %s527 = sshll.u32 %s517, 4
          %s528 = int_to_ptr.vmem [resolvable:$true] %s527
          %530 = dma.hbm_to_vmem [thread:$0]  %s526, 16, %s528, %s427
          %s531 = sadd.s32 %s422, 6
          %s532 = sld [smem:[#allocation5 + %s531]]
          %s533 = scalar_lea.hbm %s7, %s532
          %s534 = sadd.s32 6, %s425
          %s535 = scalar_lea.vmem [#allocation2], %s534
          // Predicated region
          $region109: #{tpu_custom_call.1} parent=83 // pred_check
            _
          $region110: #{tpu_custom_call.1} parent=83 // pred_check_branch
            %537 = sbr.rel target = $region112
          $region111: #{tpu_custom_call.1} parent=83 // pred_region
            %538 = sst [smem:[#allocation10]] [#allocation39]
            %539 = sst [smem:[#allocation11]] [#allocation38]
          $region112: #{tpu_custom_call.1} parent=83 // pred_fallthru
            _
          %541 = shalt.err (0)
          %s543 = sshll.u32 %s533, 4
          %s544 = int_to_ptr.hbm [resolvable:$true] %s543
          %s545 = sshll.u32 %s535, 4
          %s546 = int_to_ptr.vmem [resolvable:$true] %s545
          %548 = dma.hbm_to_vmem [thread:$0]  %s544, 16, %s546, %s427
          %s549 = sadd.s32 %s422, 7
          %s550 = sld [smem:[#allocation5 + %s549]]
          %s551 = scalar_lea.hbm %s7, %s550
          %s552 = sadd.s32 7, %s425
          %s553 = scalar_lea.vmem [#allocation2], %s552
          // Predicated region
          $region113: #{tpu_custom_call.1} parent=83 // pred_check
            _
          $region114: #{tpu_custom_call.1} parent=83 // pred_check_branch
            %555 = sbr.rel target = $region116
          $region115: #{tpu_custom_call.1} parent=83 // pred_region
            %556 = sst [smem:[#allocation10]] [#allocation41]
            %557 = sst [smem:[#allocation11]] [#allocation40]
          $region116: #{tpu_custom_call.1} parent=83 // pred_fallthru
            _
          %559 = shalt.err (0)
          %s561 = sshll.u32 %s551, 4
          %s562 = int_to_ptr.hbm [resolvable:$true] %s561
          %s563 = sshll.u32 %s553, 4
          %s564 = int_to_ptr.vmem [resolvable:$true] %s563
          %566 = dma.hbm_to_vmem [thread:$0]  %s562, 16, %s564, %s427
        $region84: #{tpu_custom_call.1} parent=43 // pred_fallthru
          _
        %s567 = smul.u32 %s279, 8
        %s568 = scalar_lea.vmem [#allocation2], %s567
        %s569 = scalar_lea.sflag [#allocation3], %s279
        %s570 = smul.u32 8, 1
        %s571 = sshll.u32 %s570, 4
        %572 = dma.done %s569, %s571
        %v573 = vld [vmem:[%s568] sm:$0xff]
        %s574 = smul.u32 %s30, 8
        %p575 = scmp.lt.s32.totalorder %s574, 0
        %s576 = ssub.s32 0, %s574
        %s577 = scalar_select %p575, %s576, %s574
        %s578 = sand.u32 %s577, 15
        %s579 = ssub.s32 0, %s578
        %s580 = scalar_select %p575, %s579, %s578
        %s581 = scalar_lea.vmem %s3, %s580
        %v582 = vld [vmem:[%s581] sm:$0xff]
        %v583 = vld [vmem:[%s273] sm:$0xff]
        %v584 = vld [vmem:[%s4] sm:$0x3]
        %vm585 = vcmp.eq.s32.totalorder %v583, 0
        %v586 = vsel %vm585, 1, 0
        %587 = vset.pattern.permute.xlu0 0
        %588 = vperm.xlu0 %587, %v586
        %v589 = vpop.permute.xlu0 %588
        %vm590 = vcmp.eq.s32.totalorder %v589, 1
        %v591 = vperm.slane %v584, 0
        %v592 = vperm.slane %v584, 1
        %v593 = vsel %vm590, %v591, %v592
        %v594 = vadd.f32 %v573, %v582
        %v595 = vadd.f32 %v594, %v593
        %596 = vadd.xlane.f32.xlu0 %v595
        %v597 = vpop.xlane.xlu0 %596
        %v598 = vmul.f32 %v597, 0.0078125
        %v599 = vsub.f32 %v595, %v598
        %v600 = vmul.f32 %v599, %v599
        %601 = vadd.xlane.f32.xlu0 %v600
        %v602 = vpop.xlane.xlu0 %601
        %v603 = vmul.f32 %v602, 0.0078125
        %v604 = vadd.f32 %v603, 1e-05
        %v605 = vrsqrt.pop %v604
        %v606 = vmul.f32 %v605, %v604
        %v607 = vmul.f32 %v606, %v605
        %v608 = vmul.f32 0.5, %v607
        %v609 = vsub.f32 1.5, %v608
        %v610 = vmul.f32 %v605, %v609
        %vm611 = vweird.f32 %v604
        %vm612 = vweird.f32 %v605
        %vm613 = vmor %vm611, %vm612
        %v614 = vsel %vm613, %v605, %v610
        %v615 = vmul.f32 %v599, %v614
        %v616 = vld [vmem:[%s5] sm:$0x1]
        %v618 = vperm.slane %v616, 0
        %v620 = vmul.f32 %v615, %v618
        %v621 = vld [vmem:[%s6] sm:$0x1]
        %v623 = vperm.slane %v621, 0
        %v625 = vadd.f32 %v620, %v623
        %626 = vst [vmem:[%s265] sm:$0xff] %v625
        %s627 = sand.u32 %s174, 1
        %s628 = scalar_lea.sflag [#allocation7], %s627
        %s629 = sand.u32 %s174, 1
        %s630 = smul.addr %s629, 8
        %s631 = scalar_lea.vmem [#allocation6], %s630
        // Predicated region
        $region117: #{tpu_custom_call.1} parent=43 // pred_check
          %p632 = pneg %p184
        $region118: #{tpu_custom_call.1} parent=43 // pred_check_branch
          %634 = sbr.rel (%p632) target = $region120
        $region119: #{tpu_custom_call.1} parent=43 // pred_region
          %636 = vsyncadd %s628, 0
          %s637 = smul.addr %s30, 8
          %s638 = scalar_lea.hbm %s8, %s637
          %s640 = sshll.u32 %s631, 4
          %s641 = int_to_ptr.vmem [resolvable:$true] %s640
          %s642 = sshll.u32 %s638, 4
          %s643 = int_to_ptr.hbm [resolvable:$true] %s642
          %645 = dma.vmem_to_hbm [thread:$0]  %s641, 128, %s643, %s628
        $region120: #{tpu_custom_call.1} parent=43 // pred_fallthru
          _
      $region44: #{tpu_custom_call.1} parent=5 // pred_fallthru
        _
      %p646 = scmp.le.s32.totalorder 2, %s25
      // Predicated region
      $region121: #{tpu_custom_call.1} parent=5 // pred_check
        %p647 = pneg %p646
      $region122: #{tpu_custom_call.1} parent=5 // pred_check_branch
        %649 = sbr.rel (%p647) target = $region124
      $region123: #{tpu_custom_call.1} parent=5 // pred_region
        %s650 = ssub.s32 %s25, 2
        // Predicated region
        $region125: #{tpu_custom_call.1} parent=123 // pred_check
          %p651 = pneg %p190
        $region126: #{tpu_custom_call.1} parent=123 // pred_check_branch
          %653 = sbr.rel (%p651) target = $region128
        $region127: #{tpu_custom_call.1} parent=123 // pred_region
          %s654 = sand.u32 %s175, 1
          %s655 = scalar_lea.sflag [#allocation7], %s654
          %s656 = sand.u32 %s175, 1
          %s657 = smul.addr %s656, 8
          %s658 = scalar_lea.vmem [#allocation6], %s657
          %660 = dma.done %s655, 128
        $region128: #{tpu_custom_call.1} parent=123 // pred_fallthru
          _
      $region124: #{tpu_custom_call.1} parent=5 // pred_fallthru
        _
    $region6: #{tpu_custom_call.1} parent=1 // loop_footer
      %s29 = sadd.s32 1, %s25
    $region7: #{tpu_custom_call.1} parent=1 // loop_footer_branch
      %24 = sbr.rel target = $region3
    $region8: #{tpu_custom_call.1} parent=1 // loop_exit
      _
    %661 = vsyncpa [#allocation7], 1
    %s662 = scalar_lea.sflag [#allocation7], 1
    %663 = vsyncpa %s662, 1
  %664 = vsyncmov [#allocation3]
  %s665 = vpop.sfrf %664
  %p666 = scmp.eq.s32.totalorder %s665, 0
  %p667 = pneg %p666
  %669 = shalt.err (%p667)
  %s670 = scalar_lea.sflag [#allocation3], 1
  %671 = vsyncmov %s670
  %s672 = vpop.sfrf %671
  %p673 = scmp.eq.s32.totalorder %s672, 0
  %p674 = pneg %p673
  %676 = shalt.err (%p674)

</llo_original>
